<compile_context>
chip_gen: v7x
topology: tpu7x:2x2x1
jax: 0.10.0
libtpu: 0.0.40
codegen_flags: <defaults>
</compile_context>

<pallas_src>
import functools

import jax
import jax.numpy as jnp
from jax.experimental import pallas as pl
from jax.experimental.pallas import tpu as pltpu


def _maxpool_relu_kernel(x_ref, o_ref, *, kh, kw, stride, out_h, out_w):
    """x_ref: (H, W, TB, C).  o_ref: (out_h, out_w, TB, C) = relu(maxpool(x))."""
    for oh in range(out_h):
        r0 = oh * stride
        # Vertical (row) max — per-row ref reads keep the live set to one (W, TB, C) tile.
        vmax = x_ref[r0]                                        # (W, TB, C)
        for k in range(1, kh):
            vmax = jnp.maximum(vmax, x_ref[r0 + k])

        if kw == 2 and stride == 2:
            # Non-endpool fast path: pair adjacent columns via a free major-axis reshape,
            # then one whole-row VPU maximum + one lane-dense per-row store.
            tb, c = vmax.shape[1], vmax.shape[2]
            pairs = vmax[: 2 * out_w].reshape(out_w, 2, tb, c)
            hmax = jnp.maximum(pairs[:, 0], pairs[:, 1])        # (out_w, TB, C)
            o_ref[oh] = jnp.maximum(hmax, 0.0).astype(o_ref.dtype)
        else:
            # Generic path. For the production endpool case (H=W=7 -> 1x1 output) this is
            # a pure streaming reduction: 6 row maxes + 6 column maxes + 1 store.
            for ow in range(out_w):
                c0 = ow * stride
                hmax = vmax[c0]                                 # (TB, C), lane-dense
                for k in range(1, kw):
                    hmax = jnp.maximum(hmax, vmax[c0 + k])
                o_ref[oh, ow] = jnp.maximum(hmax, 0.0).astype(o_ref.dtype)


def _pick_batch_tile(B, H, W, C, out_h, out_w, itemsize,
                     vmem_block_budget=8 * 1024 * 1024):
    """Largest batch tile whose double-buffered in+out blocks stay under the budget."""
    per_sample = (H * W + out_h * out_w) * C * itemsize
    cap = max(1, vmem_block_budget // (2 * per_sample))
    if B <= cap:
        return B                                   # a single block covers the whole batch
    pack = {4: 8, 2: 16, 1: 32}.get(itemsize, 8)   # sublane packing per dtype width
    tb = (min(cap, 512) // pack) * pack
    while tb >= pack:
        if B % tb == 0:
            return tb
        tb -= pack
    # TODO(synk): pad the batch axis (instead of a whole-batch fallback block) when B has
    # no pack-aligned divisor under the VMEM budget.
    return B


def film_pooling_forward(x, arch='bow_endpool_res'):
    """Pallas equivalent of FiLMPooling.forward(x) -> (B, C*out_h*out_w)."""
    B, C, H, W = x.shape
    endpool = 'endpool' in arch
    kh, kw = (7, 7) if endpool else (2, 2)
    stride = 2
    out_h = (H - kh) // stride + 1
    out_w = (W - kw) // stride + 1
    assert out_h >= 1 and out_w >= 1, "input spatial dims too small for the pool window"

    # TODO(synk): this transpose is a standalone XLA op (one extra HBM round trip of the
    # activation map); ideally the producing FiLM conv emits (H, W, B, C) directly, or this
    # whole pool+relu gets fused into that producer kernel.  Native dtype kept (no upcast).
    x_t = jnp.transpose(x, (2, 3, 0, 1))            # (H, W, B, C): channels on lanes

    tb = _pick_batch_tile(B, H, W, C, out_h, out_w, x.dtype.itemsize)
    n_b = pl.cdiv(B, tb)                            # tb divides B by construction (or tb == B)

    kernel = functools.partial(
        _maxpool_relu_kernel, kh=kh, kw=kw, stride=stride, out_h=out_h, out_w=out_w)

    pooled_t = pl.pallas_call(
        kernel,
        out_shape=jax.ShapeDtypeStruct((out_h, out_w, B, C), x.dtype),
        grid=(n_b,),
        in_specs=[pl.BlockSpec((H, W, tb, C), lambda i: (0, 0, i, 0))],
        out_specs=pl.BlockSpec((out_h, out_w, tb, C), lambda i: (0, 0, i, 0)),
        compiler_params=pltpu.CompilerParams(dimension_semantics=("parallel",)),
    )(x_t)

    # Back to PyTorch order: (B, C, out_h, out_w) row-major flatten -> (B, C*out_h*out_w).
    pooled = jnp.transpose(pooled_t, (2, 3, 0, 1))
    return pooled.reshape(B, C * out_h * out_w)


def _reference_forward(x, arch='bow_endpool_res'):
    """Pure-JAX reference reproducing the PyTorch module exactly."""
    endpool = 'endpool' in arch
    kh, kw = (7, 7) if endpool else (2, 2)
    pooled = jax.lax.reduce_window(
        x, -jnp.inf, jax.lax.max,
        window_dimensions=(1, 1, kh, kw),
        window_strides=(1, 1, 2, 2),
        padding='VALID')
    pooled = jnp.maximum(pooled, 0.0)
    return pooled.reshape(x.shape[0], -1)


if __name__ == "__main__":
    B, C, H, W = 2, 4, 16, 16     # small demo shapes (real babyai: C=128, H=W=7)

    key = jax.random.PRNGKey(0)
    x = jax.random.normal(key, (B, C, H, W), dtype=jnp.float32)

    # endpool arch: (7,7) stride-2 pool -> (B, C*5*5) for 16x16 input
    out = film_pooling_forward(x, arch='bow_endpool_res')
    jax.block_until_ready(out)
    ref = _reference_forward(x, arch='bow_endpool_res')
    assert out.shape == ref.shape, (out.shape, ref.shape)
    assert jnp.allclose(out, ref, atol=1e-6, rtol=1e-6)

    # non-endpool arch: (2,2) stride-2 pool -> (B, C*8*8)
    out2 = film_pooling_forward(x, arch='bow')
    jax.block_until_ready(out2)
    ref2 = _reference_forward(x, arch='bow')
    assert out2.shape == ref2.shape, (out2.shape, ref2.shape)
    assert jnp.allclose(out2, ref2, atol=1e-6, rtol=1e-6)

    print("KERNEL_OK")
</pallas_src>

<mosaic_0001>
module attributes {stable_mosaic.version = 11 : i64} {
  func.func @_maxpool_relu_kernel(%arg0: i32, %arg1: memref<16x16x2x4xf32, #tpu.memory_space<vmem>>, %arg2: memref<5x5x2x4xf32, #tpu.memory_space<vmem>>) attributes {dimension_semantics = [#tpu.dimension_semantics<parallel>], iteration_bounds = array<i64: 1>, scalar_prefetch = 0 : i64, scratch_operands = 0 : i64, tpu.core_type = #tpu.core_type<tc>, window_params = [{transform_indices = @transform_0, window_bounds = array<i64: 16, 16, 2, 4>}, {transform_indices = @transform_1, window_bounds = array<i64: 5, 5, 2, 4>}]} {
    %c0 = arith.constant 0 : index
    %c0_0 = arith.constant 0 : index
    %c0_1 = arith.constant 0 : index
    %c0_2 = arith.constant 0 : index
    %0 = vector.load %arg1[%c0, %c0_0, %c0_1, %c0_2] : memref<16x16x2x4xf32, #tpu.memory_space<vmem>>, vector<1x16x2x4xf32>
    %1 = vector.shape_cast %0 : vector<1x16x2x4xf32> to vector<16x2x4xf32>
    %c1 = arith.constant 1 : index
    %c0_3 = arith.constant 0 : index
    %c0_4 = arith.constant 0 : index
    %c0_5 = arith.constant 0 : index
    %2 = vector.load %arg1[%c1, %c0_3, %c0_4, %c0_5] : memref<16x16x2x4xf32, #tpu.memory_space<vmem>>, vector<1x16x2x4xf32>
    %3 = vector.shape_cast %2 : vector<1x16x2x4xf32> to vector<16x2x4xf32>
    %4 = arith.maximumf %1, %3 : vector<16x2x4xf32>
    %c2 = arith.constant 2 : index
    %c0_6 = arith.constant 0 : index
    %c0_7 = arith.constant 0 : index
    %c0_8 = arith.constant 0 : index
    %5 = vector.load %arg1[%c2, %c0_6, %c0_7, %c0_8] : memref<16x16x2x4xf32, #tpu.memory_space<vmem>>, vector<1x16x2x4xf32>
    %6 = vector.shape_cast %5 : vector<1x16x2x4xf32> to vector<16x2x4xf32>
    %7 = arith.maximumf %4, %6 : vector<16x2x4xf32>
    %c3 = arith.constant 3 : index
    %c0_9 = arith.constant 0 : index
    %c0_10 = arith.constant 0 : index
    %c0_11 = arith.constant 0 : index
    %8 = vector.load %arg1[%c3, %c0_9, %c0_10, %c0_11] : memref<16x16x2x4xf32, #tpu.memory_space<vmem>>, vector<1x16x2x4xf32>
    %9 = vector.shape_cast %8 : vector<1x16x2x4xf32> to vector<16x2x4xf32>
    %10 = arith.maximumf %7, %9 : vector<16x2x4xf32>
    %c4 = arith.constant 4 : index
    %c0_12 = arith.constant 0 : index
    %c0_13 = arith.constant 0 : index
    %c0_14 = arith.constant 0 : index
    %11 = vector.load %arg1[%c4, %c0_12, %c0_13, %c0_14] : memref<16x16x2x4xf32, #tpu.memory_space<vmem>>, vector<1x16x2x4xf32>
    %12 = vector.shape_cast %11 : vector<1x16x2x4xf32> to vector<16x2x4xf32>
    %13 = arith.maximumf %10, %12 : vector<16x2x4xf32>
    %c5 = arith.constant 5 : index
    %c0_15 = arith.constant 0 : index
    %c0_16 = arith.constant 0 : index
    %c0_17 = arith.constant 0 : index
    %14 = vector.load %arg1[%c5, %c0_15, %c0_16, %c0_17] : memref<16x16x2x4xf32, #tpu.memory_space<vmem>>, vector<1x16x2x4xf32>
    %15 = vector.shape_cast %14 : vector<1x16x2x4xf32> to vector<16x2x4xf32>
    %16 = arith.maximumf %13, %15 : vector<16x2x4xf32>
    %c6 = arith.constant 6 : index
    %c0_18 = arith.constant 0 : index
    %c0_19 = arith.constant 0 : index
    %c0_20 = arith.constant 0 : index
    %17 = vector.load %arg1[%c6, %c0_18, %c0_19, %c0_20] : memref<16x16x2x4xf32, #tpu.memory_space<vmem>>, vector<1x16x2x4xf32>
    %18 = vector.shape_cast %17 : vector<1x16x2x4xf32> to vector<16x2x4xf32>
    %19 = arith.maximumf %16, %18 : vector<16x2x4xf32>
    %20 = vector.extract_strided_slice %19 {offsets = [0, 0, 0], sizes = [1, 2, 4], strides = [1, 1, 1]} : vector<16x2x4xf32> to vector<1x2x4xf32>
    %21 = vector.shape_cast %20 : vector<1x2x4xf32> to vector<2x4xf32>
    %22 = vector.extract_strided_slice %19 {offsets = [1, 0, 0], sizes = [1, 2, 4], strides = [1, 1, 1]} : vector<16x2x4xf32> to vector<1x2x4xf32>
    %23 = vector.shape_cast %22 : vector<1x2x4xf32> to vector<2x4xf32>
    %24 = arith.maximumf %21, %23 : vector<2x4xf32>
    %25 = vector.extract_strided_slice %19 {offsets = [2, 0, 0], sizes = [1, 2, 4], strides = [1, 1, 1]} : vector<16x2x4xf32> to vector<1x2x4xf32>
    %26 = vector.shape_cast %25 : vector<1x2x4xf32> to vector<2x4xf32>
    %27 = arith.maximumf %24, %26 : vector<2x4xf32>
    %28 = vector.extract_strided_slice %19 {offsets = [3, 0, 0], sizes = [1, 2, 4], strides = [1, 1, 1]} : vector<16x2x4xf32> to vector<1x2x4xf32>
    %29 = vector.shape_cast %28 : vector<1x2x4xf32> to vector<2x4xf32>
    %30 = arith.maximumf %27, %29 : vector<2x4xf32>
    %31 = vector.extract_strided_slice %19 {offsets = [4, 0, 0], sizes = [1, 2, 4], strides = [1, 1, 1]} : vector<16x2x4xf32> to vector<1x2x4xf32>
    %32 = vector.shape_cast %31 : vector<1x2x4xf32> to vector<2x4xf32>
    %33 = arith.maximumf %30, %32 : vector<2x4xf32>
    %34 = vector.extract_strided_slice %19 {offsets = [5, 0, 0], sizes = [1, 2, 4], strides = [1, 1, 1]} : vector<16x2x4xf32> to vector<1x2x4xf32>
    %35 = vector.shape_cast %34 : vector<1x2x4xf32> to vector<2x4xf32>
    %36 = arith.maximumf %33, %35 : vector<2x4xf32>
    %37 = vector.extract_strided_slice %19 {offsets = [6, 0, 0], sizes = [1, 2, 4], strides = [1, 1, 1]} : vector<16x2x4xf32> to vector<1x2x4xf32>
    %38 = vector.shape_cast %37 : vector<1x2x4xf32> to vector<2x4xf32>
    %39 = arith.maximumf %36, %38 : vector<2x4xf32>
    %cst = arith.constant 0.000000e+00 : f32
    %40 = vector.broadcast %cst : f32 to vector<2x4xf32>
    %41 = arith.maximumf %39, %40 : vector<2x4xf32>
    %c0_21 = arith.constant 0 : index
    %c0_22 = arith.constant 0 : index
    %c0_23 = arith.constant 0 : index
    %c0_24 = arith.constant 0 : index
    %42 = vector.load %arg2[%c0_21, %c0_22, %c0_23, %c0_24] : memref<5x5x2x4xf32, #tpu.memory_space<vmem>>, vector<1x1x2x4xf32>
    %43 = vector.shape_cast %42 : vector<1x1x2x4xf32> to vector<2x4xf32>
    %44 = vector.shape_cast %41 : vector<2x4xf32> to vector<1x1x2x4xf32>
    tpu.vector_store %arg2[%c0_21, %c0_22, %c0_23, %c0_24], %44 {strides = array<i32>} : memref<5x5x2x4xf32, #tpu.memory_space<vmem>>, vector<1x1x2x4xf32>,
    %45 = vector.extract_strided_slice %19 {offsets = [2, 0, 0], sizes = [1, 2, 4], strides = [1, 1, 1]} : vector<16x2x4xf32> to vector<1x2x4xf32>
    %46 = vector.shape_cast %45 : vector<1x2x4xf32> to vector<2x4xf32>
    %47 = vector.extract_strided_slice %19 {offsets = [3, 0, 0], sizes = [1, 2, 4], strides = [1, 1, 1]} : vector<16x2x4xf32> to vector<1x2x4xf32>
    %48 = vector.shape_cast %47 : vector<1x2x4xf32> to vector<2x4xf32>
    %49 = arith.maximumf %46, %48 : vector<2x4xf32>
    %50 = vector.extract_strided_slice %19 {offsets = [4, 0, 0], sizes = [1, 2, 4], strides = [1, 1, 1]} : vector<16x2x4xf32> to vector<1x2x4xf32>
    %51 = vector.shape_cast %50 : vector<1x2x4xf32> to vector<2x4xf32>
    %52 = arith.maximumf %49, %51 : vector<2x4xf32>
    %53 = vector.extract_strided_slice %19 {offsets = [5, 0, 0], sizes = [1, 2, 4], strides = [1, 1, 1]} : vector<16x2x4xf32> to vector<1x2x4xf32>
    %54 = vector.shape_cast %53 : vector<1x2x4xf32> to vector<2x4xf32>
    %55 = arith.maximumf %52, %54 : vector<2x4xf32>
    %56 = vector.extract_strided_slice %19 {offsets = [6, 0, 0], sizes = [1, 2, 4], strides = [1, 1, 1]} : vector<16x2x4xf32> to vector<1x2x4xf32>
    %57 = vector.shape_cast %56 : vector<1x2x4xf32> to vector<2x4xf32>
    %58 = arith.maximumf %55, %57 : vector<2x4xf32>
    %59 = vector.extract_strided_slice %19 {offsets = [7, 0, 0], sizes = [1, 2, 4], strides = [1, 1, 1]} : vector<16x2x4xf32> to vector<1x2x4xf32>
    %60 = vector.shape_cast %59 : vector<1x2x4xf32> to vector<2x4xf32>
    %61 = arith.maximumf %58, %60 : vector<2x4xf32>
    %62 = vector.extract_strided_slice %19 {offsets = [8, 0, 0], sizes = [1, 2, 4], strides = [1, 1, 1]} : vector<16x2x4xf32> to vector<1x2x4xf32>
    %63 = vector.shape_cast %62 : vector<1x2x4xf32> to vector<2x4xf32>
    %64 = arith.maximumf %61, %63 : vector<2x4xf32>
    %cst_25 = arith.constant 0.000000e+00 : f32
    %65 = vector.broadcast %cst_25 : f32 to vector<2x4xf32>
    %66 = arith.maximumf %64, %65 : vector<2x4xf32>
    %c0_26 = arith.constant 0 : index
    %c1_27 = arith.constant 1 : index
    %c0_28 = arith.constant 0 : index
    %c0_29 = arith.constant 0 : index
    %67 = vector.load %arg2[%c0_26, %c1_27, %c0_28, %c0_29] : memref<5x5x2x4xf32, #tpu.memory_space<vmem>>, vector<1x1x2x4xf32>
    %68 = vector.shape_cast %67 : vector<1x1x2x4xf32> to vector<2x4xf32>
    %69 = vector.shape_cast %66 : vector<2x4xf32> to vector<1x1x2x4xf32>
    tpu.vector_store %arg2[%c0_26, %c1_27, %c0_28, %c0_29], %69 {strides = array<i32>} : memref<5x5x2x4xf32, #tpu.memory_space<vmem>>, vector<1x1x2x4xf32>,
    %70 = vector.extract_strided_slice %19 {offsets = [4, 0, 0], sizes = [1, 2, 4], strides = [1, 1, 1]} : vector<16x2x4xf32> to vector<1x2x4xf32>
    %71 = vector.shape_cast %70 : vector<1x2x4xf32> to vector<2x4xf32>
    %72 = vector.extract_strided_slice %19 {offsets = [5, 0, 0], sizes = [1, 2, 4], strides = [1, 1, 1]} : vector<16x2x4xf32> to vector<1x2x4xf32>
    %73 = vector.shape_cast %72 : vector<1x2x4xf32> to vector<2x4xf32>
    %74 = arith.maximumf %71, %73 : vector<2x4xf32>
    %75 = vector.extract_strided_slice %19 {offsets = [6, 0, 0], sizes = [1, 2, 4], strides = [1, 1, 1]} : vector<16x2x4xf32> to vector<1x2x4xf32>
    %76 = vector.shape_cast %75 : vector<1x2x4xf32> to vector<2x4xf32>
    %77 = arith.maximumf %74, %76 : vector<2x4xf32>
    %78 = vector.extract_strided_slice %19 {offsets = [7, 0, 0], sizes = [1, 2, 4], strides = [1, 1, 1]} : vector<16x2x4xf32> to vector<1x2x4xf32>
    %79 = vector.shape_cast %78 : vector<1x2x4xf32> to vector<2x4xf32>
    %80 = arith.maximumf %77, %79 : vector<2x4xf32>
    %81 = vector.extract_strided_slice %19 {offsets = [8, 0, 0], sizes = [1, 2, 4], strides = [1, 1, 1]} : vector<16x2x4xf32> to vector<1x2x4xf32>
    %82 = vector.shape_cast %81 : vector<1x2x4xf32> to vector<2x4xf32>
    %83 = arith.maximumf %80, %82 : vector<2x4xf32>
    %84 = vector.extract_strided_slice %19 {offsets = [9, 0, 0], sizes = [1, 2, 4], strides = [1, 1, 1]} : vector<16x2x4xf32> to vector<1x2x4xf32>
    %85 = vector.shape_cast %84 : vector<1x2x4xf32> to vector<2x4xf32>
    %86 = arith.maximumf %83, %85 : vector<2x4xf32>
    %87 = vector.extract_strided_slice %19 {offsets = [10, 0, 0], sizes = [1, 2, 4], strides = [1, 1, 1]} : vector<16x2x4xf32> to vector<1x2x4xf32>
    %88 = vector.shape_cast %87 : vector<1x2x4xf32> to vector<2x4xf32>
    %89 = arith.maximumf %86, %88 : vector<2x4xf32>
    %cst_30 = arith.constant 0.000000e+00 : f32
    %90 = vector.broadcast %cst_30 : f32 to vector<2x4xf32>
    %91 = arith.maximumf %89, %90 : vector<2x4xf32>
    %c0_31 = arith.constant 0 : index
    %c2_32 = arith.constant 2 : index
    %c0_33 = arith.constant 0 : index
    %c0_34 = arith.constant 0 : index
    %92 = vector.load %arg2[%c0_31, %c2_32, %c0_33, %c0_34] : memref<5x5x2x4xf32, #tpu.memory_space<vmem>>, vector<1x1x2x4xf32>
    %93 = vector.shape_cast %92 : vector<1x1x2x4xf32> to vector<2x4xf32>
    %94 = vector.shape_cast %91 : vector<2x4xf32> to vector<1x1x2x4xf32>
    tpu.vector_store %arg2[%c0_31, %c2_32, %c0_33, %c0_34], %94 {strides = array<i32>} : memref<5x5x2x4xf32, #tpu.memory_space<vmem>>, vector<1x1x2x4xf32>,
    %95 = vector.extract_strided_slice %19 {offsets = [6, 0, 0], sizes = [1, 2, 4], strides = [1, 1, 1]} : vector<16x2x4xf32> to vector<1x2x4xf32>
    %96 = vector.shape_cast %95 : vector<1x2x4xf32> to vector<2x4xf32>
    %97 = vector.extract_strided_slice %19 {offsets = [7, 0, 0], sizes = [1, 2, 4], strides = [1, 1, 1]} : vector<16x2x4xf32> to vector<1x2x4xf32>
    %98 = vector.shape_cast %97 : vector<1x2x4xf32> to vector<2x4xf32>
    %99 = arith.maximumf %96, %98 : vector<2x4xf32>
    %100 = vector.extract_strided_slice %19 {offsets = [8, 0, 0], sizes = [1, 2, 4], strides = [1, 1, 1]} : vector<16x2x4xf32> to vector<1x2x4xf32>
    %101 = vector.shape_cast %100 : vector<1x2x4xf32> to vector<2x4xf32>
    %102 = arith.maximumf %99, %101 : vector<2x4xf32>
    %103 = vector.extract_strided_slice %19 {offsets = [9, 0, 0], sizes = [1, 2, 4], strides = [1, 1, 1]} : vector<16x2x4xf32> to vector<1x2x4xf32>
    %104 = vector.shape_cast %103 : vector<1x2x4xf32> to vector<2x4xf32>
    %105 = arith.maximumf %102, %104 : vector<2x4xf32>
    %106 = vector.extract_strided_slice %19 {offsets = [10, 0, 0], sizes = [1, 2, 4], strides = [1, 1, 1]} : vector<16x2x4xf32> to vector<1x2x4xf32>
    %107 = vector.shape_cast %106 : vector<1x2x4xf32> to vector<2x4xf32>
    %108 = arith.maximumf %105, %107 : vector<2x4xf32>
    %109 = vector.extract_strided_slice %19 {offsets = [11, 0, 0], sizes = [1, 2, 4], strides = [1, 1, 1]} : vector<16x2x4xf32> to vector<1x2x4xf32>
    %110 = vector.shape_cast %109 : vector<1x2x4xf32> to vector<2x4xf32>
    %111 = arith.maximumf %108, %110 : vector<2x4xf32>
    %112 = vector.extract_strided_slice %19 {offsets = [12, 0, 0], sizes = [1, 2, 4], strides = [1, 1, 1]} : vector<16x2x4xf32> to vector<1x2x4xf32>
    %113 = vector.shape_cast %112 : vector<1x2x4xf32> to vector<2x4xf32>
    %114 = arith.maximumf %111, %113 : vector<2x4xf32>
    %cst_35 = arith.constant 0.000000e+00 : f32
    %115 = vector.broadcast %cst_35 : f32 to vector<2x4xf32>
    %116 = arith.maximumf %114, %115 : vector<2x4xf32>
    %c0_36 = arith.constant 0 : index
    %c3_37 = arith.constant 3 : index
    %c0_38 = arith.constant 0 : index
    %c0_39 = arith.constant 0 : index
    %117 = vector.load %arg2[%c0_36, %c3_37, %c0_38, %c0_39] : memref<5x5x2x4xf32, #tpu.memory_space<vmem>>, vector<1x1x2x4xf32>
    %118 = vector.shape_cast %117 : vector<1x1x2x4xf32> to vector<2x4xf32>
    %119 = vector.shape_cast %116 : vector<2x4xf32> to vector<1x1x2x4xf32>
    tpu.vector_store %arg2[%c0_36, %c3_37, %c0_38, %c0_39], %119 {strides = array<i32>} : memref<5x5x2x4xf32, #tpu.memory_space<vmem>>, vector<1x1x2x4xf32>,
    %120 = vector.extract_strided_slice %19 {offsets = [8, 0, 0], sizes = [1, 2, 4], strides = [1, 1, 1]} : vector<16x2x4xf32> to vector<1x2x4xf32>
    %121 = vector.shape_cast %120 : vector<1x2x4xf32> to vector<2x4xf32>
    %122 = vector.extract_strided_slice %19 {offsets = [9, 0, 0], sizes = [1, 2, 4], strides = [1, 1, 1]} : vector<16x2x4xf32> to vector<1x2x4xf32>
    %123 = vector.shape_cast %122 : vector<1x2x4xf32> to vector<2x4xf32>
    %124 = arith.maximumf %121, %123 : vector<2x4xf32>
    %125 = vector.extract_strided_slice %19 {offsets = [10, 0, 0], sizes = [1, 2, 4], strides = [1, 1, 1]} : vector<16x2x4xf32> to vector<1x2x4xf32>
    %126 = vector.shape_cast %125 : vector<1x2x4xf32> to vector<2x4xf32>
    %127 = arith.maximumf %124, %126 : vector<2x4xf32>
    %128 = vector.extract_strided_slice %19 {offsets = [11, 0, 0], sizes = [1, 2, 4], strides = [1, 1, 1]} : vector<16x2x4xf32> to vector<1x2x4xf32>
    %129 = vector.shape_cast %128 : vector<1x2x4xf32> to vector<2x4xf32>
    %130 = arith.maximumf %127, %129 : vector<2x4xf32>
    %131 = vector.extract_strided_slice %19 {offsets = [12, 0, 0], sizes = [1, 2, 4], strides = [1, 1, 1]} : vector<16x2x4xf32> to vector<1x2x4xf32>
    %132 = vector.shape_cast %131 : vector<1x2x4xf32> to vector<2x4xf32>
    %133 = arith.maximumf %130, %132 : vector<2x4xf32>
    %134 = vector.extract_strided_slice %19 {offsets = [13, 0, 0], sizes = [1, 2, 4], strides = [1, 1, 1]} : vector<16x2x4xf32> to vector<1x2x4xf32>
    %135 = vector.shape_cast %134 : vector<1x2x4xf32> to vector<2x4xf32>
    %136 = arith.maximumf %133, %135 : vector<2x4xf32>
    %137 = vector.extract_strided_slice %19 {offsets = [14, 0, 0], sizes = [1, 2, 4], strides = [1, 1, 1]} : vector<16x2x4xf32> to vector<1x2x4xf32>
    %138 = vector.shape_cast %137 : vector<1x2x4xf32> to vector<2x4xf32>
    %139 = arith.maximumf %136, %138 : vector<2x4xf32>
    %cst_40 = arith.constant 0.000000e+00 : f32
    %140 = vector.broadcast %cst_40 : f32 to vector<2x4xf32>
    %141 = arith.maximumf %139, %140 : vector<2x4xf32>
    %c0_41 = arith.constant 0 : index
    %c4_42 = arith.constant 4 : index
    %c0_43 = arith.constant 0 : index
    %c0_44 = arith.constant 0 : index
    %142 = vector.load %arg2[%c0_41, %c4_42, %c0_43, %c0_44] : memref<5x5x2x4xf32, #tpu.memory_space<vmem>>, vector<1x1x2x4xf32>
    %143 = vector.shape_cast %142 : vector<1x1x2x4xf32> to vector<2x4xf32>
    %144 = vector.shape_cast %141 : vector<2x4xf32> to vector<1x1x2x4xf32>
    tpu.vector_store %arg2[%c0_41, %c4_42, %c0_43, %c0_44], %144 {strides = array<i32>} : memref<5x5x2x4xf32, #tpu.memory_space<vmem>>, vector<1x1x2x4xf32>,
    %c2_45 = arith.constant 2 : index
    %c0_46 = arith.constant 0 : index
    %c0_47 = arith.constant 0 : index
    %c0_48 = arith.constant 0 : index
    %145 = vector.load %arg1[%c2_45, %c0_46, %c0_47, %c0_48] : memref<16x16x2x4xf32, #tpu.memory_space<vmem>>, vector<1x16x2x4xf32>
    %146 = vector.shape_cast %145 : vector<1x16x2x4xf32> to vector<16x2x4xf32>
    %c3_49 = arith.constant 3 : index
    %c0_50 = arith.constant 0 : index
    %c0_51 = arith.constant 0 : index
    %c0_52 = arith.constant 0 : index
    %147 = vector.load %arg1[%c3_49, %c0_50, %c0_51, %c0_52] : memref<16x16x2x4xf32, #tpu.memory_space<vmem>>, vector<1x16x2x4xf32>
    %148 = vector.shape_cast %147 : vector<1x16x2x4xf32> to vector<16x2x4xf32>
    %149 = arith.maximumf %146, %148 : vector<16x2x4xf32>
    %c4_53 = arith.constant 4 : index
    %c0_54 = arith.constant 0 : index
    %c0_55 = arith.constant 0 : index
    %c0_56 = arith.constant 0 : index
    %150 = vector.load %arg1[%c4_53, %c0_54, %c0_55, %c0_56] : memref<16x16x2x4xf32, #tpu.memory_space<vmem>>, vector<1x16x2x4xf32>
    %151 = vector.shape_cast %150 : vector<1x16x2x4xf32> to vector<16x2x4xf32>
    %152 = arith.maximumf %149, %151 : vector<16x2x4xf32>
    %c5_57 = arith.constant 5 : index
    %c0_58 = arith.constant 0 : index
    %c0_59 = arith.constant 0 : index
    %c0_60 = arith.constant 0 : index
    %153 = vector.load %arg1[%c5_57, %c0_58, %c0_59, %c0_60] : memref<16x16x2x4xf32, #tpu.memory_space<vmem>>, vector<1x16x2x4xf32>
    %154 = vector.shape_cast %153 : vector<1x16x2x4xf32> to vector<16x2x4xf32>
    %155 = arith.maximumf %152, %154 : vector<16x2x4xf32>
    %c6_61 = arith.constant 6 : index
    %c0_62 = arith.constant 0 : index
    %c0_63 = arith.constant 0 : index
    %c0_64 = arith.constant 0 : index
    %156 = vector.load %arg1[%c6_61, %c0_62, %c0_63, %c0_64] : memref<16x16x2x4xf32, #tpu.memory_space<vmem>>, vector<1x16x2x4xf32>
    %157 = vector.shape_cast %156 : vector<1x16x2x4xf32> to vector<16x2x4xf32>
    %158 = arith.maximumf %155, %157 : vector<16x2x4xf32>
    %c7 = arith.constant 7 : index
    %c0_65 = arith.constant 0 : index
    %c0_66 = arith.constant 0 : index
    %c0_67 = arith.constant 0 : index
    %159 = vector.load %arg1[%c7, %c0_65, %c0_66, %c0_67] : memref<16x16x2x4xf32, #tpu.memory_space<vmem>>, vector<1x16x2x4xf32>
    %160 = vector.shape_cast %159 : vector<1x16x2x4xf32> to vector<16x2x4xf32>
    %161 = arith.maximumf %158, %160 : vector<16x2x4xf32>
    %c8 = arith.constant 8 : index
    %c0_68 = arith.constant 0 : index
    %c0_69 = arith.constant 0 : index
    %c0_70 = arith.constant 0 : index
    %162 = vector.load %arg1[%c8, %c0_68, %c0_69, %c0_70] : memref<16x16x2x4xf32, #tpu.memory_space<vmem>>, vector<1x16x2x4xf32>
    %163 = vector.shape_cast %162 : vector<1x16x2x4xf32> to vector<16x2x4xf32>
    %164 = arith.maximumf %161, %163 : vector<16x2x4xf32>
    %165 = vector.extract_strided_slice %164 {offsets = [0, 0, 0], sizes = [1, 2, 4], strides = [1, 1, 1]} : vector<16x2x4xf32> to vector<1x2x4xf32>
    %166 = vector.shape_cast %165 : vector<1x2x4xf32> to vector<2x4xf32>
    %167 = vector.extract_strided_slice %164 {offsets = [1, 0, 0], sizes = [1, 2, 4], strides = [1, 1, 1]} : vector<16x2x4xf32> to vector<1x2x4xf32>
    %168 = vector.shape_cast %167 : vector<1x2x4xf32> to vector<2x4xf32>
    %169 = arith.maximumf %166, %168 : vector<2x4xf32>
    %170 = vector.extract_strided_slice %164 {offsets = [2, 0, 0], sizes = [1, 2, 4], strides = [1, 1, 1]} : vector<16x2x4xf32> to vector<1x2x4xf32>
    %171 = vector.shape_cast %170 : vector<1x2x4xf32> to vector<2x4xf32>
    %172 = arith.maximumf %169, %171 : vector<2x4xf32>
    %173 = vector.extract_strided_slice %164 {offsets = [3, 0, 0], sizes = [1, 2, 4], strides = [1, 1, 1]} : vector<16x2x4xf32> to vector<1x2x4xf32>
    %174 = vector.shape_cast %173 : vector<1x2x4xf32> to vector<2x4xf32>
    %175 = arith.maximumf %172, %174 : vector<2x4xf32>
    %176 = vector.extract_strided_slice %164 {offsets = [4, 0, 0], sizes = [1, 2, 4], strides = [1, 1, 1]} : vector<16x2x4xf32> to vector<1x2x4xf32>
    %177 = vector.shape_cast %176 : vector<1x2x4xf32> to vector<2x4xf32>
    %178 = arith.maximumf %175, %177 : vector<2x4xf32>
    %179 = vector.extract_strided_slice %164 {offsets = [5, 0, 0], sizes = [1, 2, 4], strides = [1, 1, 1]} : vector<16x2x4xf32> to vector<1x2x4xf32>
    %180 = vector.shape_cast %179 : vector<1x2x4xf32> to vector<2x4xf32>
    %181 = arith.maximumf %178, %180 : vector<2x4xf32>
    %182 = vector.extract_strided_slice %164 {offsets = [6, 0, 0], sizes = [1, 2, 4], strides = [1, 1, 1]} : vector<16x2x4xf32> to vector<1x2x4xf32>
    %183 = vector.shape_cast %182 : vector<1x2x4xf32> to vector<2x4xf32>
    %184 = arith.maximumf %181, %183 : vector<2x4xf32>
    %cst_71 = arith.constant 0.000000e+00 : f32
    %185 = vector.broadcast %cst_71 : f32 to vector<2x4xf32>
    %186 = arith.maximumf %184, %185 : vector<2x4xf32>
    %c1_72 = arith.constant 1 : index
    %c0_73 = arith.constant 0 : index
    %c0_74 = arith.constant 0 : index
    %c0_75 = arith.constant 0 : index
    %187 = vector.load %arg2[%c1_72, %c0_73, %c0_74, %c0_75] : memref<5x5x2x4xf32, #tpu.memory_space<vmem>>, vector<1x1x2x4xf32>
    %188 = vector.shape_cast %187 : vector<1x1x2x4xf32> to vector<2x4xf32>
    %189 = vector.shape_cast %186 : vector<2x4xf32> to vector<1x1x2x4xf32>
    tpu.vector_store %arg2[%c1_72, %c0_73, %c0_74, %c0_75], %189 {strides = array<i32>} : memref<5x5x2x4xf32, #tpu.memory_space<vmem>>, vector<1x1x2x4xf32>,
    %190 = vector.extract_strided_slice %164 {offsets = [2, 0, 0], sizes = [1, 2, 4], strides = [1, 1, 1]} : vector<16x2x4xf32> to vector<1x2x4xf32>
    %191 = vector.shape_cast %190 : vector<1x2x4xf32> to vector<2x4xf32>
    %192 = vector.extract_strided_slice %164 {offsets = [3, 0, 0], sizes = [1, 2, 4], strides = [1, 1, 1]} : vector<16x2x4xf32> to vector<1x2x4xf32>
    %193 = vector.shape_cast %192 : vector<1x2x4xf32> to vector<2x4xf32>
    %194 = arith.maximumf %191, %193 : vector<2x4xf32>
    %195 = vector.extract_strided_slice %164 {offsets = [4, 0, 0], sizes = [1, 2, 4], strides = [1, 1, 1]} : vector<16x2x4xf32> to vector<1x2x4xf32>
    %196 = vector.shape_cast %195 : vector<1x2x4xf32> to vector<2x4xf32>
    %197 = arith.maximumf %194, %196 : vector<2x4xf32>
    %198 = vector.extract_strided_slice %164 {offsets = [5, 0, 0], sizes = [1, 2, 4], strides = [1, 1, 1]} : vector<16x2x4xf32> to vector<1x2x4xf32>
    %199 = vector.shape_cast %198 : vector<1x2x4xf32> to vector<2x4xf32>
    %200 = arith.maximumf %197, %199 : vector<2x4xf32>
    %201 = vector.extract_strided_slice %164 {offsets = [6, 0, 0], sizes = [1, 2, 4], strides = [1, 1, 1]} : vector<16x2x4xf32> to vector<1x2x4xf32>
    %202 = vector.shape_cast %201 : vector<1x2x4xf32> to vector<2x4xf32>
    %203 = arith.maximumf %200, %202 : vector<2x4xf32>
    %204 = vector.extract_strided_slice %164 {offsets = [7, 0, 0], sizes = [1, 2, 4], strides = [1, 1, 1]} : vector<16x2x4xf32> to vector<1x2x4xf32>
    %205 = vector.shape_cast %204 : vector<1x2x4xf32> to vector<2x4xf32>
    %206 = arith.maximumf %203, %205 : vector<2x4xf32>
    %207 = vector.extract_strided_slice %164 {offsets = [8, 0, 0], sizes = [1, 2, 4], strides = [1, 1, 1]} : vector<16x2x4xf32> to vector<1x2x4xf32>
    %208 = vector.shape_cast %207 : vector<1x2x4xf32> to vector<2x4xf32>
    %209 = arith.maximumf %206, %208 : vector<2x4xf32>
    %cst_76 = arith.constant 0.000000e+00 : f32
    %210 = vector.broadcast %cst_76 : f32 to vector<2x4xf32>
    %211 = arith.maximumf %209, %210 : vector<2x4xf32>
    %c1_77 = arith.constant 1 : index
    %c1_78 = arith.constant 1 : index
    %c0_79 = arith.constant 0 : index
    %c0_80 = arith.constant 0 : index
    %212 = vector.load %arg2[%c1_77, %c1_78, %c0_79, %c0_80] : memref<5x5x2x4xf32, #tpu.memory_space<vmem>>, vector<1x1x2x4xf32>
    %213 = vector.shape_cast %212 : vector<1x1x2x4xf32> to vector<2x4xf32>
    %214 = vector.shape_cast %211 : vector<2x4xf32> to vector<1x1x2x4xf32>
    tpu.vector_store %arg2[%c1_77, %c1_78, %c0_79, %c0_80], %214 {strides = array<i32>} : memref<5x5x2x4xf32, #tpu.memory_space<vmem>>, vector<1x1x2x4xf32>,
    %215 = vector.extract_strided_slice %164 {offsets = [4, 0, 0], sizes = [1, 2, 4], strides = [1, 1, 1]} : vector<16x2x4xf32> to vector<1x2x4xf32>
    %216 = vector.shape_cast %215 : vector<1x2x4xf32> to vector<2x4xf32>
    %217 = vector.extract_strided_slice %164 {offsets = [5, 0, 0], sizes = [1, 2, 4], strides = [1, 1, 1]} : vector<16x2x4xf32> to vector<1x2x4xf32>
    %218 = vector.shape_cast %217 : vector<1x2x4xf32> to vector<2x4xf32>
    %219 = arith.maximumf %216, %218 : vector<2x4xf32>
    %220 = vector.extract_strided_slice %164 {offsets = [6, 0, 0], sizes = [1, 2, 4], strides = [1, 1, 1]} : vector<16x2x4xf32> to vector<1x2x4xf32>
    %221 = vector.shape_cast %220 : vector<1x2x4xf32> to vector<2x4xf32>
    %222 = arith.maximumf %219, %221 : vector<2x4xf32>
    %223 = vector.extract_strided_slice %164 {offsets = [7, 0, 0], sizes = [1, 2, 4], strides = [1, 1, 1]} : vector<16x2x4xf32> to vector<1x2x4xf32>
    %224 = vector.shape_cast %223 : vector<1x2x4xf32> to vector<2x4xf32>
    %225 = arith.maximumf %222, %224 : vector<2x4xf32>
    %226 = vector.extract_strided_slice %164 {offsets = [8, 0, 0], sizes = [1, 2, 4], strides = [1, 1, 1]} : vector<16x2x4xf32> to vector<1x2x4xf32>
    %227 = vector.shape_cast %226 : vector<1x2x4xf32> to vector<2x4xf32>
    %228 = arith.maximumf %225, %227 : vector<2x4xf32>
    %229 = vector.extract_strided_slice %164 {offsets = [9, 0, 0], sizes = [1, 2, 4], strides = [1, 1, 1]} : vector<16x2x4xf32> to vector<1x2x4xf32>
    %230 = vector.shape_cast %229 : vector<1x2x4xf32> to vector<2x4xf32>
    %231 = arith.maximumf %228, %230 : vector<2x4xf32>
    %232 = vector.extract_strided_slice %164 {offsets = [10, 0, 0], sizes = [1, 2, 4], strides = [1, 1, 1]} : vector<16x2x4xf32> to vector<1x2x4xf32>
    %233 = vector.shape_cast %232 : vector<1x2x4xf32> to vector<2x4xf32>
    %234 = arith.maximumf %231, %233 : vector<2x4xf32>
    %cst_81 = arith.constant 0.000000e+00 : f32
    %235 = vector.broadcast %cst_81 : f32 to vector<2x4xf32>
    %236 = arith.maximumf %234, %235 : vector<2x4xf32>
    %c1_82 = arith.constant 1 : index
    %c2_83 = arith.constant 2 : index
    %c0_84 = arith.constant 0 : index
    %c0_85 = arith.constant 0 : index
    %237 = vector.load %arg2[%c1_82, %c2_83, %c0_84, %c0_85] : memref<5x5x2x4xf32, #tpu.memory_space<vmem>>, vector<1x1x2x4xf32>
    %238 = vector.shape_cast %237 : vector<1x1x2x4xf32> to vector<2x4xf32>
    %239 = vector.shape_cast %236 : vector<2x4xf32> to vector<1x1x2x4xf32>
    tpu.vector_store %arg2[%c1_82, %c2_83, %c0_84, %c0_85], %239 {strides = array<i32>} : memref<5x5x2x4xf32, #tpu.memory_space<vmem>>, vector<1x1x2x4xf32>,
    %240 = vector.extract_strided_slice %164 {offsets = [6, 0, 0], sizes = [1, 2, 4], strides = [1, 1, 1]} : vector<16x2x4xf32> to vector<1x2x4xf32>
    %241 = vector.shape_cast %240 : vector<1x2x4xf32> to vector<2x4xf32>
    %242 = vector.extract_strided_slice %164 {offsets = [7, 0, 0], sizes = [1, 2, 4], strides = [1, 1, 1]} : vector<16x2x4xf32> to vector<1x2x4xf32>
    %243 = vector.shape_cast %242 : vector<1x2x4xf32> to vector<2x4xf32>
    %244 = arith.maximumf %241, %243 : vector<2x4xf32>
    %245 = vector.extract_strided_slice %164 {offsets = [8, 0, 0], sizes = [1, 2, 4], strides = [1, 1, 1]} : vector<16x2x4xf32> to vector<1x2x4xf32>
    %246 = vector.shape_cast %245 : vector<1x2x4xf32> to vector<2x4xf32>
    %247 = arith.maximumf %244, %246 : vector<2x4xf32>
    %248 = vector.extract_strided_slice %164 {offsets = [9, 0, 0], sizes = [1, 2, 4], strides = [1, 1, 1]} : vector<16x2x4xf32> to vector<1x2x4xf32>
    %249 = vector.shape_cast %248 : vector<1x2x4xf32> to vector<2x4xf32>
    %250 = arith.maximumf %247, %249 : vector<2x4xf32>
    %251 = vector.extract_strided_slice %164 {offsets = [10, 0, 0], sizes = [1, 2, 4], strides = [1, 1, 1]} : vector<16x2x4xf32> to vector<1x2x4xf32>
    %252 = vector.shape_cast %251 : vector<1x2x4xf32> to vector<2x4xf32>
    %253 = arith.maximumf %250, %252 : vector<2x4xf32>
    %254 = vector.extract_strided_slice %164 {offsets = [11, 0, 0], sizes = [1, 2, 4], strides = [1, 1, 1]} : vector<16x2x4xf32> to vector<1x2x4xf32>
    %255 = vector.shape_cast %254 : vector<1x2x4xf32> to vector<2x4xf32>
    %256 = arith.maximumf %253, %255 : vector<2x4xf32>
    %257 = vector.extract_strided_slice %164 {offsets = [12, 0, 0], sizes = [1, 2, 4], strides = [1, 1, 1]} : vector<16x2x4xf32> to vector<1x2x4xf32>
    %258 = vector.shape_cast %257 : vector<1x2x4xf32> to vector<2x4xf32>
    %259 = arith.maximumf %256, %258 : vector<2x4xf32>
    %cst_86 = arith.constant 0.000000e+00 : f32
    %260 = vector.broadcast %cst_86 : f32 to vector<2x4xf32>
    %261 = arith.maximumf %259, %260 : vector<2x4xf32>
    %c1_87 = arith.constant 1 : index
    %c3_88 = arith.constant 3 : index
    %c0_89 = arith.constant 0 : index
    %c0_90 = arith.constant 0 : index
    %262 = vector.load %arg2[%c1_87, %c3_88, %c0_89, %c0_90] : memref<5x5x2x4xf32, #tpu.memory_space<vmem>>, vector<1x1x2x4xf32>
    %263 = vector.shape_cast %262 : vector<1x1x2x4xf32> to vector<2x4xf32>
    %264 = vector.shape_cast %261 : vector<2x4xf32> to vector<1x1x2x4xf32>
    tpu.vector_store %arg2[%c1_87, %c3_88, %c0_89, %c0_90], %264 {strides = array<i32>} : memref<5x5x2x4xf32, #tpu.memory_space<vmem>>, vector<1x1x2x4xf32>,
    %265 = vector.extract_strided_slice %164 {offsets = [8, 0, 0], sizes = [1, 2, 4], strides = [1, 1, 1]} : vector<16x2x4xf32> to vector<1x2x4xf32>
    %266 = vector.shape_cast %265 : vector<1x2x4xf32> to vector<2x4xf32>
    %267 = vector.extract_strided_slice %164 {offsets = [9, 0, 0], sizes = [1, 2, 4], strides = [1, 1, 1]} : vector<16x2x4xf32> to vector<1x2x4xf32>
    %268 = vector.shape_cast %267 : vector<1x2x4xf32> to vector<2x4xf32>
    %269 = arith.maximumf %266, %268 : vector<2x4xf32>
    %270 = vector.extract_strided_slice %164 {offsets = [10, 0, 0], sizes = [1, 2, 4], strides = [1, 1, 1]} : vector<16x2x4xf32> to vector<1x2x4xf32>
    %271 = vector.shape_cast %270 : vector<1x2x4xf32> to vector<2x4xf32>
    %272 = arith.maximumf %269, %271 : vector<2x4xf32>
    %273 = vector.extract_strided_slice %164 {offsets = [11, 0, 0], sizes = [1, 2, 4], strides = [1, 1, 1]} : vector<16x2x4xf32> to vector<1x2x4xf32>
    %274 = vector.shape_cast %273 : vector<1x2x4xf32> to vector<2x4xf32>
    %275 = arith.maximumf %272, %274 : vector<2x4xf32>
    %276 = vector.extract_strided_slice %164 {offsets = [12, 0, 0], sizes = [1, 2, 4], strides = [1, 1, 1]} : vector<16x2x4xf32> to vector<1x2x4xf32>
    %277 = vector.shape_cast %276 : vector<1x2x4xf32> to vector<2x4xf32>
    %278 = arith.maximumf %275, %277 : vector<2x4xf32>
    %279 = vector.extract_strided_slice %164 {offsets = [13, 0, 0], sizes = [1, 2, 4], strides = [1, 1, 1]} : vector<16x2x4xf32> to vector<1x2x4xf32>
    %280 = vector.shape_cast %279 : vector<1x2x4xf32> to vector<2x4xf32>
    %281 = arith.maximumf %278, %280 : vector<2x4xf32>
    %282 = vector.extract_strided_slice %164 {offsets = [14, 0, 0], sizes = [1, 2, 4], strides = [1, 1, 1]} : vector<16x2x4xf32> to vector<1x2x4xf32>
    %283 = vector.shape_cast %282 : vector<1x2x4xf32> to vector<2x4xf32>
    %284 = arith.maximumf %281, %283 : vector<2x4xf32>
    %cst_91 = arith.constant 0.000000e+00 : f32
    %285 = vector.broadcast %cst_91 : f32 to vector<2x4xf32>
    %286 = arith.maximumf %284, %285 : vector<2x4xf32>
    %c1_92 = arith.constant 1 : index
    %c4_93 = arith.constant 4 : index
    %c0_94 = arith.constant 0 : index
    %c0_95 = arith.constant 0 : index
    %287 = vector.load %arg2[%c1_92, %c4_93, %c0_94, %c0_95] : memref<5x5x2x4xf32, #tpu.memory_space<vmem>>, vector<1x1x2x4xf32>
    %288 = vector.shape_cast %287 : vector<1x1x2x4xf32> to vector<2x4xf32>
    %289 = vector.shape_cast %286 : vector<2x4xf32> to vector<1x1x2x4xf32>
    tpu.vector_store %arg2[%c1_92, %c4_93, %c0_94, %c0_95], %289 {strides = array<i32>} : memref<5x5x2x4xf32, #tpu.memory_space<vmem>>, vector<1x1x2x4xf32>,
    %c4_96 = arith.constant 4 : index
    %c0_97 = arith.constant 0 : index
    %c0_98 = arith.constant 0 : index
    %c0_99 = arith.constant 0 : index
    %290 = vector.load %arg1[%c4_96, %c0_97, %c0_98, %c0_99] : memref<16x16x2x4xf32, #tpu.memory_space<vmem>>, vector<1x16x2x4xf32>
    %291 = vector.shape_cast %290 : vector<1x16x2x4xf32> to vector<16x2x4xf32>
    %c5_100 = arith.constant 5 : index
    %c0_101 = arith.constant 0 : index
    %c0_102 = arith.constant 0 : index
    %c0_103 = arith.constant 0 : index
    %292 = vector.load %arg1[%c5_100, %c0_101, %c0_102, %c0_103] : memref<16x16x2x4xf32, #tpu.memory_space<vmem>>, vector<1x16x2x4xf32>
    %293 = vector.shape_cast %292 : vector<1x16x2x4xf32> to vector<16x2x4xf32>
    %294 = arith.maximumf %291, %293 : vector<16x2x4xf32>
    %c6_104 = arith.constant 6 : index
    %c0_105 = arith.constant 0 : index
    %c0_106 = arith.constant 0 : index
    %c0_107 = arith.constant 0 : index
    %295 = vector.load %arg1[%c6_104, %c0_105, %c0_106, %c0_107] : memref<16x16x2x4xf32, #tpu.memory_space<vmem>>, vector<1x16x2x4xf32>
    %296 = vector.shape_cast %295 : vector<1x16x2x4xf32> to vector<16x2x4xf32>
    %297 = arith.maximumf %294, %296 : vector<16x2x4xf32>
    %c7_108 = arith.constant 7 : index
    %c0_109 = arith.constant 0 : index
    %c0_110 = arith.constant 0 : index
    %c0_111 = arith.constant 0 : index
    %298 = vector.load %arg1[%c7_108, %c0_109, %c0_110, %c0_111] : memref<16x16x2x4xf32, #tpu.memory_space<vmem>>, vector<1x16x2x4xf32>
    %299 = vector.shape_cast %298 : vector<1x16x2x4xf32> to vector<16x2x4xf32>
    %300 = arith.maximumf %297, %299 : vector<16x2x4xf32>
    %c8_112 = arith.constant 8 : index
    %c0_113 = arith.constant 0 : index
    %c0_114 = arith.constant 0 : index
    %c0_115 = arith.constant 0 : index
    %301 = vector.load %arg1[%c8_112, %c0_113, %c0_114, %c0_115] : memref<16x16x2x4xf32, #tpu.memory_space<vmem>>, vector<1x16x2x4xf32>
    %302 = vector.shape_cast %301 : vector<1x16x2x4xf32> to vector<16x2x4xf32>
    %303 = arith.maximumf %300, %302 : vector<16x2x4xf32>
    %c9 = arith.constant 9 : index
    %c0_116 = arith.constant 0 : index
    %c0_117 = arith.constant 0 : index
    %c0_118 = arith.constant 0 : index
    %304 = vector.load %arg1[%c9, %c0_116, %c0_117, %c0_118] : memref<16x16x2x4xf32, #tpu.memory_space<vmem>>, vector<1x16x2x4xf32>
    %305 = vector.shape_cast %304 : vector<1x16x2x4xf32> to vector<16x2x4xf32>
    %306 = arith.maximumf %303, %305 : vector<16x2x4xf32>
    %c10 = arith.constant 10 : index
    %c0_119 = arith.constant 0 : index
    %c0_120 = arith.constant 0 : index
    %c0_121 = arith.constant 0 : index
    %307 = vector.load %arg1[%c10, %c0_119, %c0_120, %c0_121] : memref<16x16x2x4xf32, #tpu.memory_space<vmem>>, vector<1x16x2x4xf32>
    %308 = vector.shape_cast %307 : vector<1x16x2x4xf32> to vector<16x2x4xf32>
    %309 = arith.maximumf %306, %308 : vector<16x2x4xf32>
    %310 = vector.extract_strided_slice %309 {offsets = [0, 0, 0], sizes = [1, 2, 4], strides = [1, 1, 1]} : vector<16x2x4xf32> to vector<1x2x4xf32>
    %311 = vector.shape_cast %310 : vector<1x2x4xf32> to vector<2x4xf32>
    %312 = vector.extract_strided_slice %309 {offsets = [1, 0, 0], sizes = [1, 2, 4], strides = [1, 1, 1]} : vector<16x2x4xf32> to vector<1x2x4xf32>
    %313 = vector.shape_cast %312 : vector<1x2x4xf32> to vector<2x4xf32>
    %314 = arith.maximumf %311, %313 : vector<2x4xf32>
    %315 = vector.extract_strided_slice %309 {offsets = [2, 0, 0], sizes = [1, 2, 4], strides = [1, 1, 1]} : vector<16x2x4xf32> to vector<1x2x4xf32>
    %316 = vector.shape_cast %315 : vector<1x2x4xf32> to vector<2x4xf32>
    %317 = arith.maximumf %314, %316 : vector<2x4xf32>
    %318 = vector.extract_strided_slice %309 {offsets = [3, 0, 0], sizes = [1, 2, 4], strides = [1, 1, 1]} : vector<16x2x4xf32> to vector<1x2x4xf32>
    %319 = vector.shape_cast %318 : vector<1x2x4xf32> to vector<2x4xf32>
    %320 = arith.maximumf %317, %319 : vector<2x4xf32>
    %321 = vector.extract_strided_slice %309 {offsets = [4, 0, 0], sizes = [1, 2, 4], strides = [1, 1, 1]} : vector<16x2x4xf32> to vector<1x2x4xf32>
    %322 = vector.shape_cast %321 : vector<1x2x4xf32> to vector<2x4xf32>
    %323 = arith.maximumf %320, %322 : vector<2x4xf32>
    %324 = vector.extract_strided_slice %309 {offsets = [5, 0, 0], sizes = [1, 2, 4], strides = [1, 1, 1]} : vector<16x2x4xf32> to vector<1x2x4xf32>
    %325 = vector.shape_cast %324 : vector<1x2x4xf32> to vector<2x4xf32>
    %326 = arith.maximumf %323, %325 : vector<2x4xf32>
    %327 = vector.extract_strided_slice %309 {offsets = [6, 0, 0], sizes = [1, 2, 4], strides = [1, 1, 1]} : vector<16x2x4xf32> to vector<1x2x4xf32>
    %328 = vector.shape_cast %327 : vector<1x2x4xf32> to vector<2x4xf32>
    %329 = arith.maximumf %326, %328 : vector<2x4xf32>
    %cst_122 = arith.constant 0.000000e+00 : f32
    %330 = vector.broadcast %cst_122 : f32 to vector<2x4xf32>
    %331 = arith.maximumf %329, %330 : vector<2x4xf32>
    %c2_123 = arith.constant 2 : index
    %c0_124 = arith.constant 0 : index
    %c0_125 = arith.constant 0 : index
    %c0_126 = arith.constant 0 : index
    %332 = vector.load %arg2[%c2_123, %c0_124, %c0_125, %c0_126] : memref<5x5x2x4xf32, #tpu.memory_space<vmem>>, vector<1x1x2x4xf32>
    %333 = vector.shape_cast %332 : vector<1x1x2x4xf32> to vector<2x4xf32>
    %334 = vector.shape_cast %331 : vector<2x4xf32> to vector<1x1x2x4xf32>
    tpu.vector_store %arg2[%c2_123, %c0_124, %c0_125, %c0_126], %334 {strides = array<i32>} : memref<5x5x2x4xf32, #tpu.memory_space<vmem>>, vector<1x1x2x4xf32>,
    %335 = vector.extract_strided_slice %309 {offsets = [2, 0, 0], sizes = [1, 2, 4], strides = [1, 1, 1]} : vector<16x2x4xf32> to vector<1x2x4xf32>
    %336 = vector.shape_cast %335 : vector<1x2x4xf32> to vector<2x4xf32>
    %337 = vector.extract_strided_slice %309 {offsets = [3, 0, 0], sizes = [1, 2, 4], strides = [1, 1, 1]} : vector<16x2x4xf32> to vector<1x2x4xf32>
    %338 = vector.shape_cast %337 : vector<1x2x4xf32> to vector<2x4xf32>
    %339 = arith.maximumf %336, %338 : vector<2x4xf32>
    %340 = vector.extract_strided_slice %309 {offsets = [4, 0, 0], sizes = [1, 2, 4], strides = [1, 1, 1]} : vector<16x2x4xf32> to vector<1x2x4xf32>
    %341 = vector.shape_cast %340 : vector<1x2x4xf32> to vector<2x4xf32>
    %342 = arith.maximumf %339, %341 : vector<2x4xf32>
    %343 = vector.extract_strided_slice %309 {offsets = [5, 0, 0], sizes = [1, 2, 4], strides = [1, 1, 1]} : vector<16x2x4xf32> to vector<1x2x4xf32>
    %344 = vector.shape_cast %343 : vector<1x2x4xf32> to vector<2x4xf32>
    %345 = arith.maximumf %342, %344 : vector<2x4xf32>
    %346 = vector.extract_strided_slice %309 {offsets = [6, 0, 0], sizes = [1, 2, 4], strides = [1, 1, 1]} : vector<16x2x4xf32> to vector<1x2x4xf32>
    %347 = vector.shape_cast %346 : vector<1x2x4xf32> to vector<2x4xf32>
    %348 = arith.maximumf %345, %347 : vector<2x4xf32>
    %349 = vector.extract_strided_slice %309 {offsets = [7, 0, 0], sizes = [1, 2, 4], strides = [1, 1, 1]} : vector<16x2x4xf32> to vector<1x2x4xf32>
    %350 = vector.shape_cast %349 : vector<1x2x4xf32> to vector<2x4xf32>
    %351 = arith.maximumf %348, %350 : vector<2x4xf32>
    %352 = vector.extract_strided_slice %309 {offsets = [8, 0, 0], sizes = [1, 2, 4], strides = [1, 1, 1]} : vector<16x2x4xf32> to vector<1x2x4xf32>
    %353 = vector.shape_cast %352 : vector<1x2x4xf32> to vector<2x4xf32>
    %354 = arith.maximumf %351, %353 : vector<2x4xf32>
    %cst_127 = arith.constant 0.000000e+00 : f32
    %355 = vector.broadcast %cst_127 : f32 to vector<2x4xf32>
    %356 = arith.maximumf %354, %355 : vector<2x4xf32>
    %c2_128 = arith.constant 2 : index
    %c1_129 = arith.constant 1 : index
    %c0_130 = arith.constant 0 : index
    %c0_131 = arith.constant 0 : index
    %357 = vector.load %arg2[%c2_128, %c1_129, %c0_130, %c0_131] : memref<5x5x2x4xf32, #tpu.memory_space<vmem>>, vector<1x1x2x4xf32>
    %358 = vector.shape_cast %357 : vector<1x1x2x4xf32> to vector<2x4xf32>
    %359 = vector.shape_cast %356 : vector<2x4xf32> to vector<1x1x2x4xf32>
    tpu.vector_store %arg2[%c2_128, %c1_129, %c0_130, %c0_131], %359 {strides = array<i32>} : memref<5x5x2x4xf32, #tpu.memory_space<vmem>>, vector<1x1x2x4xf32>,
    %360 = vector.extract_strided_slice %309 {offsets = [4, 0, 0], sizes = [1, 2, 4], strides = [1, 1, 1]} : vector<16x2x4xf32> to vector<1x2x4xf32>
    %361 = vector.shape_cast %360 : vector<1x2x4xf32> to vector<2x4xf32>
    %362 = vector.extract_strided_slice %309 {offsets = [5, 0, 0], sizes = [1, 2, 4], strides = [1, 1, 1]} : vector<16x2x4xf32> to vector<1x2x4xf32>
    %363 = vector.shape_cast %362 : vector<1x2x4xf32> to vector<2x4xf32>
    %364 = arith.maximumf %361, %363 : vector<2x4xf32>
    %365 = vector.extract_strided_slice %309 {offsets = [6, 0, 0], sizes = [1, 2, 4], strides = [1, 1, 1]} : vector<16x2x4xf32> to vector<1x2x4xf32>
    %366 = vector.shape_cast %365 : vector<1x2x4xf32> to vector<2x4xf32>
    %367 = arith.maximumf %364, %366 : vector<2x4xf32>
    %368 = vector.extract_strided_slice %309 {offsets = [7, 0, 0], sizes = [1, 2, 4], strides = [1, 1, 1]} : vector<16x2x4xf32> to vector<1x2x4xf32>
    %369 = vector.shape_cast %368 : vector<1x2x4xf32> to vector<2x4xf32>
    %370 = arith.maximumf %367, %369 : vector<2x4xf32>
    %371 = vector.extract_strided_slice %309 {offsets = [8, 0, 0], sizes = [1, 2, 4], strides = [1, 1, 1]} : vector<16x2x4xf32> to vector<1x2x4xf32>
    %372 = vector.shape_cast %371 : vector<1x2x4xf32> to vector<2x4xf32>
    %373 = arith.maximumf %370, %372 : vector<2x4xf32>
    %374 = vector.extract_strided_slice %309 {offsets = [9, 0, 0], sizes = [1, 2, 4], strides = [1, 1, 1]} : vector<16x2x4xf32> to vector<1x2x4xf32>
    %375 = vector.shape_cast %374 : vector<1x2x4xf32> to vector<2x4xf32>
    %376 = arith.maximumf %373, %375 : vector<2x4xf32>
    %377 = vector.extract_strided_slice %309 {offsets = [10, 0, 0], sizes = [1, 2, 4], strides = [1, 1, 1]} : vector<16x2x4xf32> to vector<1x2x4xf32>
    %378 = vector.shape_cast %377 : vector<1x2x4xf32> to vector<2x4xf32>
    %379 = arith.maximumf %376, %378 : vector<2x4xf32>
    %cst_132 = arith.constant 0.000000e+00 : f32
    %380 = vector.broadcast %cst_132 : f32 to vector<2x4xf32>
    %381 = arith.maximumf %379, %380 : vector<2x4xf32>
    %c2_133 = arith.constant 2 : index
    %c2_134 = arith.constant 2 : index
    %c0_135 = arith.constant 0 : index
    %c0_136 = arith.constant 0 : index
    %382 = vector.load %arg2[%c2_133, %c2_134, %c0_135, %c0_136] : memref<5x5x2x4xf32, #tpu.memory_space<vmem>>, vector<1x1x2x4xf32>
    %383 = vector.shape_cast %382 : vector<1x1x2x4xf32> to vector<2x4xf32>
    %384 = vector.shape_cast %381 : vector<2x4xf32> to vector<1x1x2x4xf32>
    tpu.vector_store %arg2[%c2_133, %c2_134, %c0_135, %c0_136], %384 {strides = array<i32>} : memref<5x5x2x4xf32, #tpu.memory_space<vmem>>, vector<1x1x2x4xf32>,
    %385 = vector.extract_strided_slice %309 {offsets = [6, 0, 0], sizes = [1, 2, 4], strides = [1, 1, 1]} : vector<16x2x4xf32> to vector<1x2x4xf32>
    %386 = vector.shape_cast %385 : vector<1x2x4xf32> to vector<2x4xf32>
    %387 = vector.extract_strided_slice %309 {offsets = [7, 0, 0], sizes = [1, 2, 4], strides = [1, 1, 1]} : vector<16x2x4xf32> to vector<1x2x4xf32>
    %388 = vector.shape_cast %387 : vector<1x2x4xf32> to vector<2x4xf32>
    %389 = arith.maximumf %386, %388 : vector<2x4xf32>
    %390 = vector.extract_strided_slice %309 {offsets = [8, 0, 0], sizes = [1, 2, 4], strides = [1, 1, 1]} : vector<16x2x4xf32> to vector<1x2x4xf32>
    %391 = vector.shape_cast %390 : vector<1x2x4xf32> to vector<2x4xf32>
    %392 = arith.maximumf %389, %391 : vector<2x4xf32>
    %393 = vector.extract_strided_slice %309 {offsets = [9, 0, 0], sizes = [1, 2, 4], strides = [1, 1, 1]} : vector<16x2x4xf32> to vector<1x2x4xf32>
    %394 = vector.shape_cast %393 : vector<1x2x4xf32> to vector<2x4xf32>
    %395 = arith.maximumf %392, %394 : vector<2x4xf32>
    %396 = vector.extract_strided_slice %309 {offsets = [10, 0, 0], sizes = [1, 2, 4], strides = [1, 1, 1]} : vector<16x2x4xf32> to vector<1x2x4xf32>
    %397 = vector.shape_cast %396 : vector<1x2x4xf32> to vector<2x4xf32>
    %398 = arith.maximumf %395, %397 : vector<2x4xf32>
    %399 = vector.extract_strided_slice %309 {offsets = [11, 0, 0], sizes = [1, 2, 4], strides = [1, 1, 1]} : vector<16x2x4xf32> to vector<1x2x4xf32>
    %400 = vector.shape_cast %399 : vector<1x2x4xf32> to vector<2x4xf32>
    %401 = arith.maximumf %398, %400 : vector<2x4xf32>
    %402 = vector.extract_strided_slice %309 {offsets = [12, 0, 0], sizes = [1, 2, 4], strides = [1, 1, 1]} : vector<16x2x4xf32> to vector<1x2x4xf32>
    %403 = vector.shape_cast %402 : vector<1x2x4xf32> to vector<2x4xf32>
    %404 = arith.maximumf %401, %403 : vector<2x4xf32>
    %cst_137 = arith.constant 0.000000e+00 : f32
    %405 = vector.broadcast %cst_137 : f32 to vector<2x4xf32>
    %406 = arith.maximumf %404, %405 : vector<2x4xf32>
    %c2_138 = arith.constant 2 : index
    %c3_139 = arith.constant 3 : index
    %c0_140 = arith.constant 0 : index
    %c0_141 = arith.constant 0 : index
    %407 = vector.load %arg2[%c2_138, %c3_139, %c0_140, %c0_141] : memref<5x5x2x4xf32, #tpu.memory_space<vmem>>, vector<1x1x2x4xf32>
    %408 = vector.shape_cast %407 : vector<1x1x2x4xf32> to vector<2x4xf32>
    %409 = vector.shape_cast %406 : vector<2x4xf32> to vector<1x1x2x4xf32>
    tpu.vector_store %arg2[%c2_138, %c3_139, %c0_140, %c0_141], %409 {strides = array<i32>} : memref<5x5x2x4xf32, #tpu.memory_space<vmem>>, vector<1x1x2x4xf32>,
    %410 = vector.extract_strided_slice %309 {offsets = [8, 0, 0], sizes = [1, 2, 4], strides = [1, 1, 1]} : vector<16x2x4xf32> to vector<1x2x4xf32>
    %411 = vector.shape_cast %410 : vector<1x2x4xf32> to vector<2x4xf32>
    %412 = vector.extract_strided_slice %309 {offsets = [9, 0, 0], sizes = [1, 2, 4], strides = [1, 1, 1]} : vector<16x2x4xf32> to vector<1x2x4xf32>
    %413 = vector.shape_cast %412 : vector<1x2x4xf32> to vector<2x4xf32>
    %414 = arith.maximumf %411, %413 : vector<2x4xf32>
    %415 = vector.extract_strided_slice %309 {offsets = [10, 0, 0], sizes = [1, 2, 4], strides = [1, 1, 1]} : vector<16x2x4xf32> to vector<1x2x4xf32>
    %416 = vector.shape_cast %415 : vector<1x2x4xf32> to vector<2x4xf32>
    %417 = arith.maximumf %414, %416 : vector<2x4xf32>
    %418 = vector.extract_strided_slice %309 {offsets = [11, 0, 0], sizes = [1, 2, 4], strides = [1, 1, 1]} : vector<16x2x4xf32> to vector<1x2x4xf32>
    %419 = vector.shape_cast %418 : vector<1x2x4xf32> to vector<2x4xf32>
    %420 = arith.maximumf %417, %419 : vector<2x4xf32>
    %421 = vector.extract_strided_slice %309 {offsets = [12, 0, 0], sizes = [1, 2, 4], strides = [1, 1, 1]} : vector<16x2x4xf32> to vector<1x2x4xf32>
    %422 = vector.shape_cast %421 : vector<1x2x4xf32> to vector<2x4xf32>
    %423 = arith.maximumf %420, %422 : vector<2x4xf32>
    %424 = vector.extract_strided_slice %309 {offsets = [13, 0, 0], sizes = [1, 2, 4], strides = [1, 1, 1]} : vector<16x2x4xf32> to vector<1x2x4xf32>
    %425 = vector.shape_cast %424 : vector<1x2x4xf32> to vector<2x4xf32>
    %426 = arith.maximumf %423, %425 : vector<2x4xf32>
    %427 = vector.extract_strided_slice %309 {offsets = [14, 0, 0], sizes = [1, 2, 4], strides = [1, 1, 1]} : vector<16x2x4xf32> to vector<1x2x4xf32>
    %428 = vector.shape_cast %427 : vector<1x2x4xf32> to vector<2x4xf32>
    %429 = arith.maximumf %426, %428 : vector<2x4xf32>
    %cst_142 = arith.constant 0.000000e+00 : f32
    %430 = vector.broadcast %cst_142 : f32 to vector<2x4xf32>
    %431 = arith.maximumf %429, %430 : vector<2x4xf32>
    %c2_143 = arith.constant 2 : index
    %c4_144 = arith.constant 4 : index
    %c0_145 = arith.constant 0 : index
    %c0_146 = arith.constant 0 : index
    %432 = vector.load %arg2[%c2_143, %c4_144, %c0_145, %c0_146] : memref<5x5x2x4xf32, #tpu.memory_space<vmem>>, vector<1x1x2x4xf32>
    %433 = vector.shape_cast %432 : vector<1x1x2x4xf32> to vector<2x4xf32>
    %434 = vector.shape_cast %431 : vector<2x4xf32> to vector<1x1x2x4xf32>
    tpu.vector_store %arg2[%c2_143, %c4_144, %c0_145, %c0_146], %434 {strides = array<i32>} : memref<5x5x2x4xf32, #tpu.memory_space<vmem>>, vector<1x1x2x4xf32>,
    %c6_147 = arith.constant 6 : index
    %c0_148 = arith.constant 0 : index
    %c0_149 = arith.constant 0 : index
    %c0_150 = arith.constant 0 : index
    %435 = vector.load %arg1[%c6_147, %c0_148, %c0_149, %c0_150] : memref<16x16x2x4xf32, #tpu.memory_space<vmem>>, vector<1x16x2x4xf32>
    %436 = vector.shape_cast %435 : vector<1x16x2x4xf32> to vector<16x2x4xf32>
    %c7_151 = arith.constant 7 : index
    %c0_152 = arith.constant 0 : index
    %c0_153 = arith.constant 0 : index
    %c0_154 = arith.constant 0 : index
    %437 = vector.load %arg1[%c7_151, %c0_152, %c0_153, %c0_154] : memref<16x16x2x4xf32, #tpu.memory_space<vmem>>, vector<1x16x2x4xf32>
    %438 = vector.shape_cast %437 : vector<1x16x2x4xf32> to vector<16x2x4xf32>
    %439 = arith.maximumf %436, %438 : vector<16x2x4xf32>
    %c8_155 = arith.constant 8 : index
    %c0_156 = arith.constant 0 : index
    %c0_157 = arith.constant 0 : index
    %c0_158 = arith.constant 0 : index
    %440 = vector.load %arg1[%c8_155, %c0_156, %c0_157, %c0_158] : memref<16x16x2x4xf32, #tpu.memory_space<vmem>>, vector<1x16x2x4xf32>
    %441 = vector.shape_cast %440 : vector<1x16x2x4xf32> to vector<16x2x4xf32>
    %442 = arith.maximumf %439, %441 : vector<16x2x4xf32>
    %c9_159 = arith.constant 9 : index
    %c0_160 = arith.constant 0 : index
    %c0_161 = arith.constant 0 : index
    %c0_162 = arith.constant 0 : index
    %443 = vector.load %arg1[%c9_159, %c0_160, %c0_161, %c0_162] : memref<16x16x2x4xf32, #tpu.memory_space<vmem>>, vector<1x16x2x4xf32>
    %444 = vector.shape_cast %443 : vector<1x16x2x4xf32> to vector<16x2x4xf32>
    %445 = arith.maximumf %442, %444 : vector<16x2x4xf32>
    %c10_163 = arith.constant 10 : index
    %c0_164 = arith.constant 0 : index
    %c0_165 = arith.constant 0 : index
    %c0_166 = arith.constant 0 : index
    %446 = vector.load %arg1[%c10_163, %c0_164, %c0_165, %c0_166] : memref<16x16x2x4xf32, #tpu.memory_space<vmem>>, vector<1x16x2x4xf32>
    %447 = vector.shape_cast %446 : vector<1x16x2x4xf32> to vector<16x2x4xf32>
    %448 = arith.maximumf %445, %447 : vector<16x2x4xf32>
    %c11 = arith.constant 11 : index
    %c0_167 = arith.constant 0 : index
    %c0_168 = arith.constant 0 : index
    %c0_169 = arith.constant 0 : index
    %449 = vector.load %arg1[%c11, %c0_167, %c0_168, %c0_169] : memref<16x16x2x4xf32, #tpu.memory_space<vmem>>, vector<1x16x2x4xf32>
    %450 = vector.shape_cast %449 : vector<1x16x2x4xf32> to vector<16x2x4xf32>
    %451 = arith.maximumf %448, %450 : vector<16x2x4xf32>
    %c12 = arith.constant 12 : index
    %c0_170 = arith.constant 0 : index
    %c0_171 = arith.constant 0 : index
    %c0_172 = arith.constant 0 : index
    %452 = vector.load %arg1[%c12, %c0_170, %c0_171, %c0_172] : memref<16x16x2x4xf32, #tpu.memory_space<vmem>>, vector<1x16x2x4xf32>
    %453 = vector.shape_cast %452 : vector<1x16x2x4xf32> to vector<16x2x4xf32>
    %454 = arith.maximumf %451, %453 : vector<16x2x4xf32>
    %455 = vector.extract_strided_slice %454 {offsets = [0, 0, 0], sizes = [1, 2, 4], strides = [1, 1, 1]} : vector<16x2x4xf32> to vector<1x2x4xf32>
    %456 = vector.shape_cast %455 : vector<1x2x4xf32> to vector<2x4xf32>
    %457 = vector.extract_strided_slice %454 {offsets = [1, 0, 0], sizes = [1, 2, 4], strides = [1, 1, 1]} : vector<16x2x4xf32> to vector<1x2x4xf32>
    %458 = vector.shape_cast %457 : vector<1x2x4xf32> to vector<2x4xf32>
    %459 = arith.maximumf %456, %458 : vector<2x4xf32>
    %460 = vector.extract_strided_slice %454 {offsets = [2, 0, 0], sizes = [1, 2, 4], strides = [1, 1, 1]} : vector<16x2x4xf32> to vector<1x2x4xf32>
    %461 = vector.shape_cast %460 : vector<1x2x4xf32> to vector<2x4xf32>
    %462 = arith.maximumf %459, %461 : vector<2x4xf32>
    %463 = vector.extract_strided_slice %454 {offsets = [3, 0, 0], sizes = [1, 2, 4], strides = [1, 1, 1]} : vector<16x2x4xf32> to vector<1x2x4xf32>
    %464 = vector.shape_cast %463 : vector<1x2x4xf32> to vector<2x4xf32>
    %465 = arith.maximumf %462, %464 : vector<2x4xf32>
    %466 = vector.extract_strided_slice %454 {offsets = [4, 0, 0], sizes = [1, 2, 4], strides = [1, 1, 1]} : vector<16x2x4xf32> to vector<1x2x4xf32>
    %467 = vector.shape_cast %466 : vector<1x2x4xf32> to vector<2x4xf32>
    %468 = arith.maximumf %465, %467 : vector<2x4xf32>
    %469 = vector.extract_strided_slice %454 {offsets = [5, 0, 0], sizes = [1, 2, 4], strides = [1, 1, 1]} : vector<16x2x4xf32> to vector<1x2x4xf32>
    %470 = vector.shape_cast %469 : vector<1x2x4xf32> to vector<2x4xf32>
    %471 = arith.maximumf %468, %470 : vector<2x4xf32>
    %472 = vector.extract_strided_slice %454 {offsets = [6, 0, 0], sizes = [1, 2, 4], strides = [1, 1, 1]} : vector<16x2x4xf32> to vector<1x2x4xf32>
    %473 = vector.shape_cast %472 : vector<1x2x4xf32> to vector<2x4xf32>
    %474 = arith.maximumf %471, %473 : vector<2x4xf32>
    %cst_173 = arith.constant 0.000000e+00 : f32
    %475 = vector.broadcast %cst_173 : f32 to vector<2x4xf32>
    %476 = arith.maximumf %474, %475 : vector<2x4xf32>
    %c3_174 = arith.constant 3 : index
    %c0_175 = arith.constant 0 : index
    %c0_176 = arith.constant 0 : index
    %c0_177 = arith.constant 0 : index
    %477 = vector.load %arg2[%c3_174, %c0_175, %c0_176, %c0_177] : memref<5x5x2x4xf32, #tpu.memory_space<vmem>>, vector<1x1x2x4xf32>
    %478 = vector.shape_cast %477 : vector<1x1x2x4xf32> to vector<2x4xf32>
    %479 = vector.shape_cast %476 : vector<2x4xf32> to vector<1x1x2x4xf32>
    tpu.vector_store %arg2[%c3_174, %c0_175, %c0_176, %c0_177], %479 {strides = array<i32>} : memref<5x5x2x4xf32, #tpu.memory_space<vmem>>, vector<1x1x2x4xf32>,
    %480 = vector.extract_strided_slice %454 {offsets = [2, 0, 0], sizes = [1, 2, 4], strides = [1, 1, 1]} : vector<16x2x4xf32> to vector<1x2x4xf32>
    %481 = vector.shape_cast %480 : vector<1x2x4xf32> to vector<2x4xf32>
    %482 = vector.extract_strided_slice %454 {offsets = [3, 0, 0], sizes = [1, 2, 4], strides = [1, 1, 1]} : vector<16x2x4xf32> to vector<1x2x4xf32>
    %483 = vector.shape_cast %482 : vector<1x2x4xf32> to vector<2x4xf32>
    %484 = arith.maximumf %481, %483 : vector<2x4xf32>
    %485 = vector.extract_strided_slice %454 {offsets = [4, 0, 0], sizes = [1, 2, 4], strides = [1, 1, 1]} : vector<16x2x4xf32> to vector<1x2x4xf32>
    %486 = vector.shape_cast %485 : vector<1x2x4xf32> to vector<2x4xf32>
    %487 = arith.maximumf %484, %486 : vector<2x4xf32>
    %488 = vector.extract_strided_slice %454 {offsets = [5, 0, 0], sizes = [1, 2, 4], strides = [1, 1, 1]} : vector<16x2x4xf32> to vector<1x2x4xf32>
    %489 = vector.shape_cast %488 : vector<1x2x4xf32> to vector<2x4xf32>
    %490 = arith.maximumf %487, %489 : vector<2x4xf32>
    %491 = vector.extract_strided_slice %454 {offsets = [6, 0, 0], sizes = [1, 2, 4], strides = [1, 1, 1]} : vector<16x2x4xf32> to vector<1x2x4xf32>
    %492 = vector.shape_cast %491 : vector<1x2x4xf32> to vector<2x4xf32>
    %493 = arith.maximumf %490, %492 : vector<2x4xf32>
    %494 = vector.extract_strided_slice %454 {offsets = [7, 0, 0], sizes = [1, 2, 4], strides = [1, 1, 1]} : vector<16x2x4xf32> to vector<1x2x4xf32>
    %495 = vector.shape_cast %494 : vector<1x2x4xf32> to vector<2x4xf32>
    %496 = arith.maximumf %493, %495 : vector<2x4xf32>
    %497 = vector.extract_strided_slice %454 {offsets = [8, 0, 0], sizes = [1, 2, 4], strides = [1, 1, 1]} : vector<16x2x4xf32> to vector<1x2x4xf32>
    %498 = vector.shape_cast %497 : vector<1x2x4xf32> to vector<2x4xf32>
    %499 = arith.maximumf %496, %498 : vector<2x4xf32>
    %cst_178 = arith.constant 0.000000e+00 : f32
    %500 = vector.broadcast %cst_178 : f32 to vector<2x4xf32>
    %501 = arith.maximumf %499, %500 : vector<2x4xf32>
    %c3_179 = arith.constant 3 : index
    %c1_180 = arith.constant 1 : index
    %c0_181 = arith.constant 0 : index
    %c0_182 = arith.constant 0 : index
    %502 = vector.load %arg2[%c3_179, %c1_180, %c0_181, %c0_182] : memref<5x5x2x4xf32, #tpu.memory_space<vmem>>, vector<1x1x2x4xf32>
    %503 = vector.shape_cast %502 : vector<1x1x2x4xf32> to vector<2x4xf32>
    %504 = vector.shape_cast %501 : vector<2x4xf32> to vector<1x1x2x4xf32>
    tpu.vector_store %arg2[%c3_179, %c1_180, %c0_181, %c0_182], %504 {strides = array<i32>} : memref<5x5x2x4xf32, #tpu.memory_space<vmem>>, vector<1x1x2x4xf32>,
    %505 = vector.extract_strided_slice %454 {offsets = [4, 0, 0], sizes = [1, 2, 4], strides = [1, 1, 1]} : vector<16x2x4xf32> to vector<1x2x4xf32>
    %506 = vector.shape_cast %505 : vector<1x2x4xf32> to vector<2x4xf32>
    %507 = vector.extract_strided_slice %454 {offsets = [5, 0, 0], sizes = [1, 2, 4], strides = [1, 1, 1]} : vector<16x2x4xf32> to vector<1x2x4xf32>
    %508 = vector.shape_cast %507 : vector<1x2x4xf32> to vector<2x4xf32>
    %509 = arith.maximumf %506, %508 : vector<2x4xf32>
    %510 = vector.extract_strided_slice %454 {offsets = [6, 0, 0], sizes = [1, 2, 4], strides = [1, 1, 1]} : vector<16x2x4xf32> to vector<1x2x4xf32>
    %511 = vector.shape_cast %510 : vector<1x2x4xf32> to vector<2x4xf32>
    %512 = arith.maximumf %509, %511 : vector<2x4xf32>
    %513 = vector.extract_strided_slice %454 {offsets = [7, 0, 0], sizes = [1, 2, 4], strides = [1, 1, 1]} : vector<16x2x4xf32> to vector<1x2x4xf32>
    %514 = vector.shape_cast %513 : vector<1x2x4xf32> to vector<2x4xf32>
    %515 = arith.maximumf %512, %514 : vector<2x4xf32>
    %516 = vector.extract_strided_slice %454 {offsets = [8, 0, 0], sizes = [1, 2, 4], strides = [1, 1, 1]} : vector<16x2x4xf32> to vector<1x2x4xf32>
    %517 = vector.shape_cast %516 : vector<1x2x4xf32> to vector<2x4xf32>
    %518 = arith.maximumf %515, %517 : vector<2x4xf32>
    %519 = vector.extract_strided_slice %454 {offsets = [9, 0, 0], sizes = [1, 2, 4], strides = [1, 1, 1]} : vector<16x2x4xf32> to vector<1x2x4xf32>
    %520 = vector.shape_cast %519 : vector<1x2x4xf32> to vector<2x4xf32>
    %521 = arith.maximumf %518, %520 : vector<2x4xf32>
    %522 = vector.extract_strided_slice %454 {offsets = [10, 0, 0], sizes = [1, 2, 4], strides = [1, 1, 1]} : vector<16x2x4xf32> to vector<1x2x4xf32>
    %523 = vector.shape_cast %522 : vector<1x2x4xf32> to vector<2x4xf32>
    %524 = arith.maximumf %521, %523 : vector<2x4xf32>
    %cst_183 = arith.constant 0.000000e+00 : f32
    %525 = vector.broadcast %cst_183 : f32 to vector<2x4xf32>
    %526 = arith.maximumf %524, %525 : vector<2x4xf32>
    %c3_184 = arith.constant 3 : index
    %c2_185 = arith.constant 2 : index
    %c0_186 = arith.constant 0 : index
    %c0_187 = arith.constant 0 : index
    %527 = vector.load %arg2[%c3_184, %c2_185, %c0_186, %c0_187] : memref<5x5x2x4xf32, #tpu.memory_space<vmem>>, vector<1x1x2x4xf32>
    %528 = vector.shape_cast %527 : vector<1x1x2x4xf32> to vector<2x4xf32>
    %529 = vector.shape_cast %526 : vector<2x4xf32> to vector<1x1x2x4xf32>
    tpu.vector_store %arg2[%c3_184, %c2_185, %c0_186, %c0_187], %529 {strides = array<i32>} : memref<5x5x2x4xf32, #tpu.memory_space<vmem>>, vector<1x1x2x4xf32>,
    %530 = vector.extract_strided_slice %454 {offsets = [6, 0, 0], sizes = [1, 2, 4], strides = [1, 1, 1]} : vector<16x2x4xf32> to vector<1x2x4xf32>
    %531 = vector.shape_cast %530 : vector<1x2x4xf32> to vector<2x4xf32>
    %532 = vector.extract_strided_slice %454 {offsets = [7, 0, 0], sizes = [1, 2, 4], strides = [1, 1, 1]} : vector<16x2x4xf32> to vector<1x2x4xf32>
    %533 = vector.shape_cast %532 : vector<1x2x4xf32> to vector<2x4xf32>
    %534 = arith.maximumf %531, %533 : vector<2x4xf32>
    %535 = vector.extract_strided_slice %454 {offsets = [8, 0, 0], sizes = [1, 2, 4], strides = [1, 1, 1]} : vector<16x2x4xf32> to vector<1x2x4xf32>
    %536 = vector.shape_cast %535 : vector<1x2x4xf32> to vector<2x4xf32>
    %537 = arith.maximumf %534, %536 : vector<2x4xf32>
    %538 = vector.extract_strided_slice %454 {offsets = [9, 0, 0], sizes = [1, 2, 4], strides = [1, 1, 1]} : vector<16x2x4xf32> to vector<1x2x4xf32>
    %539 = vector.shape_cast %538 : vector<1x2x4xf32> to vector<2x4xf32>
    %540 = arith.maximumf %537, %539 : vector<2x4xf32>
    %541 = vector.extract_strided_slice %454 {offsets = [10, 0, 0], sizes = [1, 2, 4], strides = [1, 1, 1]} : vector<16x2x4xf32> to vector<1x2x4xf32>
    %542 = vector.shape_cast %541 : vector<1x2x4xf32> to vector<2x4xf32>
    %543 = arith.maximumf %540, %542 : vector<2x4xf32>
    %544 = vector.extract_strided_slice %454 {offsets = [11, 0, 0], sizes = [1, 2, 4], strides = [1, 1, 1]} : vector<16x2x4xf32> to vector<1x2x4xf32>
    %545 = vector.shape_cast %544 : vector<1x2x4xf32> to vector<2x4xf32>
    %546 = arith.maximumf %543, %545 : vector<2x4xf32>
    %547 = vector.extract_strided_slice %454 {offsets = [12, 0, 0], sizes = [1, 2, 4], strides = [1, 1, 1]} : vector<16x2x4xf32> to vector<1x2x4xf32>
    %548 = vector.shape_cast %547 : vector<1x2x4xf32> to vector<2x4xf32>
    %549 = arith.maximumf %546, %548 : vector<2x4xf32>
    %cst_188 = arith.constant 0.000000e+00 : f32
    %550 = vector.broadcast %cst_188 : f32 to vector<2x4xf32>
    %551 = arith.maximumf %549, %550 : vector<2x4xf32>
    %c3_189 = arith.constant 3 : index
    %c3_190 = arith.constant 3 : index
    %c0_191 = arith.constant 0 : index
    %c0_192 = arith.constant 0 : index
    %552 = vector.load %arg2[%c3_189, %c3_190, %c0_191, %c0_192] : memref<5x5x2x4xf32, #tpu.memory_space<vmem>>, vector<1x1x2x4xf32>
    %553 = vector.shape_cast %552 : vector<1x1x2x4xf32> to vector<2x4xf32>
    %554 = vector.shape_cast %551 : vector<2x4xf32> to vector<1x1x2x4xf32>
    tpu.vector_store %arg2[%c3_189, %c3_190, %c0_191, %c0_192], %554 {strides = array<i32>} : memref<5x5x2x4xf32, #tpu.memory_space<vmem>>, vector<1x1x2x4xf32>,
    %555 = vector.extract_strided_slice %454 {offsets = [8, 0, 0], sizes = [1, 2, 4], strides = [1, 1, 1]} : vector<16x2x4xf32> to vector<1x2x4xf32>
    %556 = vector.shape_cast %555 : vector<1x2x4xf32> to vector<2x4xf32>
    %557 = vector.extract_strided_slice %454 {offsets = [9, 0, 0], sizes = [1, 2, 4], strides = [1, 1, 1]} : vector<16x2x4xf32> to vector<1x2x4xf32>
    %558 = vector.shape_cast %557 : vector<1x2x4xf32> to vector<2x4xf32>
    %559 = arith.maximumf %556, %558 : vector<2x4xf32>
    %560 = vector.extract_strided_slice %454 {offsets = [10, 0, 0], sizes = [1, 2, 4], strides = [1, 1, 1]} : vector<16x2x4xf32> to vector<1x2x4xf32>
    %561 = vector.shape_cast %560 : vector<1x2x4xf32> to vector<2x4xf32>
    %562 = arith.maximumf %559, %561 : vector<2x4xf32>
    %563 = vector.extract_strided_slice %454 {offsets = [11, 0, 0], sizes = [1, 2, 4], strides = [1, 1, 1]} : vector<16x2x4xf32> to vector<1x2x4xf32>
    %564 = vector.shape_cast %563 : vector<1x2x4xf32> to vector<2x4xf32>
    %565 = arith.maximumf %562, %564 : vector<2x4xf32>
    %566 = vector.extract_strided_slice %454 {offsets = [12, 0, 0], sizes = [1, 2, 4], strides = [1, 1, 1]} : vector<16x2x4xf32> to vector<1x2x4xf32>
    %567 = vector.shape_cast %566 : vector<1x2x4xf32> to vector<2x4xf32>
    %568 = arith.maximumf %565, %567 : vector<2x4xf32>
    %569 = vector.extract_strided_slice %454 {offsets = [13, 0, 0], sizes = [1, 2, 4], strides = [1, 1, 1]} : vector<16x2x4xf32> to vector<1x2x4xf32>
    %570 = vector.shape_cast %569 : vector<1x2x4xf32> to vector<2x4xf32>
    %571 = arith.maximumf %568, %570 : vector<2x4xf32>
    %572 = vector.extract_strided_slice %454 {offsets = [14, 0, 0], sizes = [1, 2, 4], strides = [1, 1, 1]} : vector<16x2x4xf32> to vector<1x2x4xf32>
    %573 = vector.shape_cast %572 : vector<1x2x4xf32> to vector<2x4xf32>
    %574 = arith.maximumf %571, %573 : vector<2x4xf32>
    %cst_193 = arith.constant 0.000000e+00 : f32
    %575 = vector.broadcast %cst_193 : f32 to vector<2x4xf32>
    %576 = arith.maximumf %574, %575 : vector<2x4xf32>
    %c3_194 = arith.constant 3 : index
    %c4_195 = arith.constant 4 : index
    %c0_196 = arith.constant 0 : index
    %c0_197 = arith.constant 0 : index
    %577 = vector.load %arg2[%c3_194, %c4_195, %c0_196, %c0_197] : memref<5x5x2x4xf32, #tpu.memory_space<vmem>>, vector<1x1x2x4xf32>
    %578 = vector.shape_cast %577 : vector<1x1x2x4xf32> to vector<2x4xf32>
    %579 = vector.shape_cast %576 : vector<2x4xf32> to vector<1x1x2x4xf32>
    tpu.vector_store %arg2[%c3_194, %c4_195, %c0_196, %c0_197], %579 {strides = array<i32>} : memref<5x5x2x4xf32, #tpu.memory_space<vmem>>, vector<1x1x2x4xf32>,
    %c8_198 = arith.constant 8 : index
    %c0_199 = arith.constant 0 : index
    %c0_200 = arith.constant 0 : index
    %c0_201 = arith.constant 0 : index
    %580 = vector.load %arg1[%c8_198, %c0_199, %c0_200, %c0_201] : memref<16x16x2x4xf32, #tpu.memory_space<vmem>>, vector<1x16x2x4xf32>
    %581 = vector.shape_cast %580 : vector<1x16x2x4xf32> to vector<16x2x4xf32>
    %c9_202 = arith.constant 9 : index
    %c0_203 = arith.constant 0 : index
    %c0_204 = arith.constant 0 : index
    %c0_205 = arith.constant 0 : index
    %582 = vector.load %arg1[%c9_202, %c0_203, %c0_204, %c0_205] : memref<16x16x2x4xf32, #tpu.memory_space<vmem>>, vector<1x16x2x4xf32>
    %583 = vector.shape_cast %582 : vector<1x16x2x4xf32> to vector<16x2x4xf32>
    %584 = arith.maximumf %581, %583 : vector<16x2x4xf32>
    %c10_206 = arith.constant 10 : index
    %c0_207 = arith.constant 0 : index
    %c0_208 = arith.constant 0 : index
    %c0_209 = arith.constant 0 : index
    %585 = vector.load %arg1[%c10_206, %c0_207, %c0_208, %c0_209] : memref<16x16x2x4xf32, #tpu.memory_space<vmem>>, vector<1x16x2x4xf32>
    %586 = vector.shape_cast %585 : vector<1x16x2x4xf32> to vector<16x2x4xf32>
    %587 = arith.maximumf %584, %586 : vector<16x2x4xf32>
    %c11_210 = arith.constant 11 : index
    %c0_211 = arith.constant 0 : index
    %c0_212 = arith.constant 0 : index
    %c0_213 = arith.constant 0 : index
    %588 = vector.load %arg1[%c11_210, %c0_211, %c0_212, %c0_213] : memref<16x16x2x4xf32, #tpu.memory_space<vmem>>, vector<1x16x2x4xf32>
    %589 = vector.shape_cast %588 : vector<1x16x2x4xf32> to vector<16x2x4xf32>
    %590 = arith.maximumf %587, %589 : vector<16x2x4xf32>
    %c12_214 = arith.constant 12 : index
    %c0_215 = arith.constant 0 : index
    %c0_216 = arith.constant 0 : index
    %c0_217 = arith.constant 0 : index
    %591 = vector.load %arg1[%c12_214, %c0_215, %c0_216, %c0_217] : memref<16x16x2x4xf32, #tpu.memory_space<vmem>>, vector<1x16x2x4xf32>
    %592 = vector.shape_cast %591 : vector<1x16x2x4xf32> to vector<16x2x4xf32>
    %593 = arith.maximumf %590, %592 : vector<16x2x4xf32>
    %c13 = arith.constant 13 : index
    %c0_218 = arith.constant 0 : index
    %c0_219 = arith.constant 0 : index
    %c0_220 = arith.constant 0 : index
    %594 = vector.load %arg1[%c13, %c0_218, %c0_219, %c0_220] : memref<16x16x2x4xf32, #tpu.memory_space<vmem>>, vector<1x16x2x4xf32>
    %595 = vector.shape_cast %594 : vector<1x16x2x4xf32> to vector<16x2x4xf32>
    %596 = arith.maximumf %593, %595 : vector<16x2x4xf32>
    %c14 = arith.constant 14 : index
    %c0_221 = arith.constant 0 : index
    %c0_222 = arith.constant 0 : index
    %c0_223 = arith.constant 0 : index
    %597 = vector.load %arg1[%c14, %c0_221, %c0_222, %c0_223] : memref<16x16x2x4xf32, #tpu.memory_space<vmem>>, vector<1x16x2x4xf32>
    %598 = vector.shape_cast %597 : vector<1x16x2x4xf32> to vector<16x2x4xf32>
    %599 = arith.maximumf %596, %598 : vector<16x2x4xf32>
    %600 = vector.extract_strided_slice %599 {offsets = [0, 0, 0], sizes = [1, 2, 4], strides = [1, 1, 1]} : vector<16x2x4xf32> to vector<1x2x4xf32>
    %601 = vector.shape_cast %600 : vector<1x2x4xf32> to vector<2x4xf32>
    %602 = vector.extract_strided_slice %599 {offsets = [1, 0, 0], sizes = [1, 2, 4], strides = [1, 1, 1]} : vector<16x2x4xf32> to vector<1x2x4xf32>
    %603 = vector.shape_cast %602 : vector<1x2x4xf32> to vector<2x4xf32>
    %604 = arith.maximumf %601, %603 : vector<2x4xf32>
    %605 = vector.extract_strided_slice %599 {offsets = [2, 0, 0], sizes = [1, 2, 4], strides = [1, 1, 1]} : vector<16x2x4xf32> to vector<1x2x4xf32>
    %606 = vector.shape_cast %605 : vector<1x2x4xf32> to vector<2x4xf32>
    %607 = arith.maximumf %604, %606 : vector<2x4xf32>
    %608 = vector.extract_strided_slice %599 {offsets = [3, 0, 0], sizes = [1, 2, 4], strides = [1, 1, 1]} : vector<16x2x4xf32> to vector<1x2x4xf32>
    %609 = vector.shape_cast %608 : vector<1x2x4xf32> to vector<2x4xf32>
    %610 = arith.maximumf %607, %609 : vector<2x4xf32>
    %611 = vector.extract_strided_slice %599 {offsets = [4, 0, 0], sizes = [1, 2, 4], strides = [1, 1, 1]} : vector<16x2x4xf32> to vector<1x2x4xf32>
    %612 = vector.shape_cast %611 : vector<1x2x4xf32> to vector<2x4xf32>
    %613 = arith.maximumf %610, %612 : vector<2x4xf32>
    %614 = vector.extract_strided_slice %599 {offsets = [5, 0, 0], sizes = [1, 2, 4], strides = [1, 1, 1]} : vector<16x2x4xf32> to vector<1x2x4xf32>
    %615 = vector.shape_cast %614 : vector<1x2x4xf32> to vector<2x4xf32>
    %616 = arith.maximumf %613, %615 : vector<2x4xf32>
    %617 = vector.extract_strided_slice %599 {offsets = [6, 0, 0], sizes = [1, 2, 4], strides = [1, 1, 1]} : vector<16x2x4xf32> to vector<1x2x4xf32>
    %618 = vector.shape_cast %617 : vector<1x2x4xf32> to vector<2x4xf32>
    %619 = arith.maximumf %616, %618 : vector<2x4xf32>
    %cst_224 = arith.constant 0.000000e+00 : f32
    %620 = vector.broadcast %cst_224 : f32 to vector<2x4xf32>
    %621 = arith.maximumf %619, %620 : vector<2x4xf32>
    %c4_225 = arith.constant 4 : index
    %c0_226 = arith.constant 0 : index
    %c0_227 = arith.constant 0 : index
    %c0_228 = arith.constant 0 : index
    %622 = vector.load %arg2[%c4_225, %c0_226, %c0_227, %c0_228] : memref<5x5x2x4xf32, #tpu.memory_space<vmem>>, vector<1x1x2x4xf32>
    %623 = vector.shape_cast %622 : vector<1x1x2x4xf32> to vector<2x4xf32>
    %624 = vector.shape_cast %621 : vector<2x4xf32> to vector<1x1x2x4xf32>
    tpu.vector_store %arg2[%c4_225, %c0_226, %c0_227, %c0_228], %624 {strides = array<i32>} : memref<5x5x2x4xf32, #tpu.memory_space<vmem>>, vector<1x1x2x4xf32>,
    %625 = vector.extract_strided_slice %599 {offsets = [2, 0, 0], sizes = [1, 2, 4], strides = [1, 1, 1]} : vector<16x2x4xf32> to vector<1x2x4xf32>
    %626 = vector.shape_cast %625 : vector<1x2x4xf32> to vector<2x4xf32>
    %627 = vector.extract_strided_slice %599 {offsets = [3, 0, 0], sizes = [1, 2, 4], strides = [1, 1, 1]} : vector<16x2x4xf32> to vector<1x2x4xf32>
    %628 = vector.shape_cast %627 : vector<1x2x4xf32> to vector<2x4xf32>
    %629 = arith.maximumf %626, %628 : vector<2x4xf32>
    %630 = vector.extract_strided_slice %599 {offsets = [4, 0, 0], sizes = [1, 2, 4], strides = [1, 1, 1]} : vector<16x2x4xf32> to vector<1x2x4xf32>
    %631 = vector.shape_cast %630 : vector<1x2x4xf32> to vector<2x4xf32>
    %632 = arith.maximumf %629, %631 : vector<2x4xf32>
    %633 = vector.extract_strided_slice %599 {offsets = [5, 0, 0], sizes = [1, 2, 4], strides = [1, 1, 1]} : vector<16x2x4xf32> to vector<1x2x4xf32>
    %634 = vector.shape_cast %633 : vector<1x2x4xf32> to vector<2x4xf32>
    %635 = arith.maximumf %632, %634 : vector<2x4xf32>
    %636 = vector.extract_strided_slice %599 {offsets = [6, 0, 0], sizes = [1, 2, 4], strides = [1, 1, 1]} : vector<16x2x4xf32> to vector<1x2x4xf32>
    %637 = vector.shape_cast %636 : vector<1x2x4xf32> to vector<2x4xf32>
    %638 = arith.maximumf %635, %637 : vector<2x4xf32>
    %639 = vector.extract_strided_slice %599 {offsets = [7, 0, 0], sizes = [1, 2, 4], strides = [1, 1, 1]} : vector<16x2x4xf32> to vector<1x2x4xf32>
    %640 = vector.shape_cast %639 : vector<1x2x4xf32> to vector<2x4xf32>
    %641 = arith.maximumf %638, %640 : vector<2x4xf32>
    %642 = vector.extract_strided_slice %599 {offsets = [8, 0, 0], sizes = [1, 2, 4], strides = [1, 1, 1]} : vector<16x2x4xf32> to vector<1x2x4xf32>
    %643 = vector.shape_cast %642 : vector<1x2x4xf32> to vector<2x4xf32>
    %644 = arith.maximumf %641, %643 : vector<2x4xf32>
    %cst_229 = arith.constant 0.000000e+00 : f32
    %645 = vector.broadcast %cst_229 : f32 to vector<2x4xf32>
    %646 = arith.maximumf %644, %645 : vector<2x4xf32>
    %c4_230 = arith.constant 4 : index
    %c1_231 = arith.constant 1 : index
    %c0_232 = arith.constant 0 : index
    %c0_233 = arith.constant 0 : index
    %647 = vector.load %arg2[%c4_230, %c1_231, %c0_232, %c0_233] : memref<5x5x2x4xf32, #tpu.memory_space<vmem>>, vector<1x1x2x4xf32>
    %648 = vector.shape_cast %647 : vector<1x1x2x4xf32> to vector<2x4xf32>
    %649 = vector.shape_cast %646 : vector<2x4xf32> to vector<1x1x2x4xf32>
    tpu.vector_store %arg2[%c4_230, %c1_231, %c0_232, %c0_233], %649 {strides = array<i32>} : memref<5x5x2x4xf32, #tpu.memory_space<vmem>>, vector<1x1x2x4xf32>,
    %650 = vector.extract_strided_slice %599 {offsets = [4, 0, 0], sizes = [1, 2, 4], strides = [1, 1, 1]} : vector<16x2x4xf32> to vector<1x2x4xf32>
    %651 = vector.shape_cast %650 : vector<1x2x4xf32> to vector<2x4xf32>
    %652 = vector.extract_strided_slice %599 {offsets = [5, 0, 0], sizes = [1, 2, 4], strides = [1, 1, 1]} : vector<16x2x4xf32> to vector<1x2x4xf32>
    %653 = vector.shape_cast %652 : vector<1x2x4xf32> to vector<2x4xf32>
    %654 = arith.maximumf %651, %653 : vector<2x4xf32>
    %655 = vector.extract_strided_slice %599 {offsets = [6, 0, 0], sizes = [1, 2, 4], strides = [1, 1, 1]} : vector<16x2x4xf32> to vector<1x2x4xf32>
    %656 = vector.shape_cast %655 : vector<1x2x4xf32> to vector<2x4xf32>
    %657 = arith.maximumf %654, %656 : vector<2x4xf32>
    %658 = vector.extract_strided_slice %599 {offsets = [7, 0, 0], sizes = [1, 2, 4], strides = [1, 1, 1]} : vector<16x2x4xf32> to vector<1x2x4xf32>
    %659 = vector.shape_cast %658 : vector<1x2x4xf32> to vector<2x4xf32>
    %660 = arith.maximumf %657, %659 : vector<2x4xf32>
    %661 = vector.extract_strided_slice %599 {offsets = [8, 0, 0], sizes = [1, 2, 4], strides = [1, 1, 1]} : vector<16x2x4xf32> to vector<1x2x4xf32>
    %662 = vector.shape_cast %661 : vector<1x2x4xf32> to vector<2x4xf32>
    %663 = arith.maximumf %660, %662 : vector<2x4xf32>
    %664 = vector.extract_strided_slice %599 {offsets = [9, 0, 0], sizes = [1, 2, 4], strides = [1, 1, 1]} : vector<16x2x4xf32> to vector<1x2x4xf32>
    %665 = vector.shape_cast %664 : vector<1x2x4xf32> to vector<2x4xf32>
    %666 = arith.maximumf %663, %665 : vector<2x4xf32>
    %667 = vector.extract_strided_slice %599 {offsets = [10, 0, 0], sizes = [1, 2, 4], strides = [1, 1, 1]} : vector<16x2x4xf32> to vector<1x2x4xf32>
    %668 = vector.shape_cast %667 : vector<1x2x4xf32> to vector<2x4xf32>
    %669 = arith.maximumf %666, %668 : vector<2x4xf32>
    %cst_234 = arith.constant 0.000000e+00 : f32
    %670 = vector.broadcast %cst_234 : f32 to vector<2x4xf32>
    %671 = arith.maximumf %669, %670 : vector<2x4xf32>
    %c4_235 = arith.constant 4 : index
    %c2_236 = arith.constant 2 : index
    %c0_237 = arith.constant 0 : index
    %c0_238 = arith.constant 0 : index
    %672 = vector.load %arg2[%c4_235, %c2_236, %c0_237, %c0_238] : memref<5x5x2x4xf32, #tpu.memory_space<vmem>>, vector<1x1x2x4xf32>
    %673 = vector.shape_cast %672 : vector<1x1x2x4xf32> to vector<2x4xf32>
    %674 = vector.shape_cast %671 : vector<2x4xf32> to vector<1x1x2x4xf32>
    tpu.vector_store %arg2[%c4_235, %c2_236, %c0_237, %c0_238], %674 {strides = array<i32>} : memref<5x5x2x4xf32, #tpu.memory_space<vmem>>, vector<1x1x2x4xf32>,
    %675 = vector.extract_strided_slice %599 {offsets = [6, 0, 0], sizes = [1, 2, 4], strides = [1, 1, 1]} : vector<16x2x4xf32> to vector<1x2x4xf32>
    %676 = vector.shape_cast %675 : vector<1x2x4xf32> to vector<2x4xf32>
    %677 = vector.extract_strided_slice %599 {offsets = [7, 0, 0], sizes = [1, 2, 4], strides = [1, 1, 1]} : vector<16x2x4xf32> to vector<1x2x4xf32>
    %678 = vector.shape_cast %677 : vector<1x2x4xf32> to vector<2x4xf32>
    %679 = arith.maximumf %676, %678 : vector<2x4xf32>
    %680 = vector.extract_strided_slice %599 {offsets = [8, 0, 0], sizes = [1, 2, 4], strides = [1, 1, 1]} : vector<16x2x4xf32> to vector<1x2x4xf32>
    %681 = vector.shape_cast %680 : vector<1x2x4xf32> to vector<2x4xf32>
    %682 = arith.maximumf %679, %681 : vector<2x4xf32>
    %683 = vector.extract_strided_slice %599 {offsets = [9, 0, 0], sizes = [1, 2, 4], strides = [1, 1, 1]} : vector<16x2x4xf32> to vector<1x2x4xf32>
    %684 = vector.shape_cast %683 : vector<1x2x4xf32> to vector<2x4xf32>
    %685 = arith.maximumf %682, %684 : vector<2x4xf32>
    %686 = vector.extract_strided_slice %599 {offsets = [10, 0, 0], sizes = [1, 2, 4], strides = [1, 1, 1]} : vector<16x2x4xf32> to vector<1x2x4xf32>
    %687 = vector.shape_cast %686 : vector<1x2x4xf32> to vector<2x4xf32>
    %688 = arith.maximumf %685, %687 : vector<2x4xf32>
    %689 = vector.extract_strided_slice %599 {offsets = [11, 0, 0], sizes = [1, 2, 4], strides = [1, 1, 1]} : vector<16x2x4xf32> to vector<1x2x4xf32>
    %690 = vector.shape_cast %689 : vector<1x2x4xf32> to vector<2x4xf32>
    %691 = arith.maximumf %688, %690 : vector<2x4xf32>
    %692 = vector.extract_strided_slice %599 {offsets = [12, 0, 0], sizes = [1, 2, 4], strides = [1, 1, 1]} : vector<16x2x4xf32> to vector<1x2x4xf32>
    %693 = vector.shape_cast %692 : vector<1x2x4xf32> to vector<2x4xf32>
    %694 = arith.maximumf %691, %693 : vector<2x4xf32>
    %cst_239 = arith.constant 0.000000e+00 : f32
    %695 = vector.broadcast %cst_239 : f32 to vector<2x4xf32>
    %696 = arith.maximumf %694, %695 : vector<2x4xf32>
    %c4_240 = arith.constant 4 : index
    %c3_241 = arith.constant 3 : index
    %c0_242 = arith.constant 0 : index
    %c0_243 = arith.constant 0 : index
    %697 = vector.load %arg2[%c4_240, %c3_241, %c0_242, %c0_243] : memref<5x5x2x4xf32, #tpu.memory_space<vmem>>, vector<1x1x2x4xf32>
    %698 = vector.shape_cast %697 : vector<1x1x2x4xf32> to vector<2x4xf32>
    %699 = vector.shape_cast %696 : vector<2x4xf32> to vector<1x1x2x4xf32>
    tpu.vector_store %arg2[%c4_240, %c3_241, %c0_242, %c0_243], %699 {strides = array<i32>} : memref<5x5x2x4xf32, #tpu.memory_space<vmem>>, vector<1x1x2x4xf32>,
    %700 = vector.extract_strided_slice %599 {offsets = [8, 0, 0], sizes = [1, 2, 4], strides = [1, 1, 1]} : vector<16x2x4xf32> to vector<1x2x4xf32>
    %701 = vector.shape_cast %700 : vector<1x2x4xf32> to vector<2x4xf32>
    %702 = vector.extract_strided_slice %599 {offsets = [9, 0, 0], sizes = [1, 2, 4], strides = [1, 1, 1]} : vector<16x2x4xf32> to vector<1x2x4xf32>
    %703 = vector.shape_cast %702 : vector<1x2x4xf32> to vector<2x4xf32>
    %704 = arith.maximumf %701, %703 : vector<2x4xf32>
    %705 = vector.extract_strided_slice %599 {offsets = [10, 0, 0], sizes = [1, 2, 4], strides = [1, 1, 1]} : vector<16x2x4xf32> to vector<1x2x4xf32>
    %706 = vector.shape_cast %705 : vector<1x2x4xf32> to vector<2x4xf32>
    %707 = arith.maximumf %704, %706 : vector<2x4xf32>
    %708 = vector.extract_strided_slice %599 {offsets = [11, 0, 0], sizes = [1, 2, 4], strides = [1, 1, 1]} : vector<16x2x4xf32> to vector<1x2x4xf32>
    %709 = vector.shape_cast %708 : vector<1x2x4xf32> to vector<2x4xf32>
    %710 = arith.maximumf %707, %709 : vector<2x4xf32>
    %711 = vector.extract_strided_slice %599 {offsets = [12, 0, 0], sizes = [1, 2, 4], strides = [1, 1, 1]} : vector<16x2x4xf32> to vector<1x2x4xf32>
    %712 = vector.shape_cast %711 : vector<1x2x4xf32> to vector<2x4xf32>
    %713 = arith.maximumf %710, %712 : vector<2x4xf32>
    %714 = vector.extract_strided_slice %599 {offsets = [13, 0, 0], sizes = [1, 2, 4], strides = [1, 1, 1]} : vector<16x2x4xf32> to vector<1x2x4xf32>
    %715 = vector.shape_cast %714 : vector<1x2x4xf32> to vector<2x4xf32>
    %716 = arith.maximumf %713, %715 : vector<2x4xf32>
    %717 = vector.extract_strided_slice %599 {offsets = [14, 0, 0], sizes = [1, 2, 4], strides = [1, 1, 1]} : vector<16x2x4xf32> to vector<1x2x4xf32>
    %718 = vector.shape_cast %717 : vector<1x2x4xf32> to vector<2x4xf32>
    %719 = arith.maximumf %716, %718 : vector<2x4xf32>
    %cst_244 = arith.constant 0.000000e+00 : f32
    %720 = vector.broadcast %cst_244 : f32 to vector<2x4xf32>
    %721 = arith.maximumf %719, %720 : vector<2x4xf32>
    %c4_245 = arith.constant 4 : index
    %c4_246 = arith.constant 4 : index
    %c0_247 = arith.constant 0 : index
    %c0_248 = arith.constant 0 : index
    %722 = vector.load %arg2[%c4_245, %c4_246, %c0_247, %c0_248] : memref<5x5x2x4xf32, #tpu.memory_space<vmem>>, vector<1x1x2x4xf32>
    %723 = vector.shape_cast %722 : vector<1x1x2x4xf32> to vector<2x4xf32>
    %724 = vector.shape_cast %721 : vector<2x4xf32> to vector<1x1x2x4xf32>
    tpu.vector_store %arg2[%c4_245, %c4_246, %c0_247, %c0_248], %724 {strides = array<i32>} : memref<5x5x2x4xf32, #tpu.memory_space<vmem>>, vector<1x1x2x4xf32>,
    return
  }
  func.func @transform_0(%arg0: i32) -> (i32, i32, i32, i32) {
    %c0_i32 = arith.constant 0 : i32
    %c0_i32_0 = arith.constant 0 : i32
    %c0_i32_1 = arith.constant 0 : i32
    %c0_i32_2 = arith.constant 0 : i32
    return %c0_i32, %c0_i32_0, %arg0, %c0_i32_1 : i32, i32, i32, i32
  }
  func.func @transform_1(%arg0: i32) -> (i32, i32, i32, i32) {
    %c0_i32 = arith.constant 0 : i32
    %c0_i32_0 = arith.constant 0 : i32
    %c0_i32_1 = arith.constant 0 : i32
    %c0_i32_2 = arith.constant 0 : i32
    return %c0_i32, %c0_i32_0, %arg0, %c0_i32_1 : i32, i32, i32, i32
  }
}

</mosaic_0001>

<llo_original>
// kernel: tpu_custom_call.1
$region0: #{tpu_custom_call.1}
  #allocation0 [shape = 'u32[]', space=smem, size = 0x4, offset = 0x4, fixed_abs, tag = 'smem constant byte address 0x4 - core index']
  #allocation1 [shape = 'u32[144,128]{1,0:T(1,128)}', space=vmem, size = 0x12000, scoped, tag = 'internal scratch']
  %s0 = inlined_call_operand.vmem [shape: f32[16,16,2,4], index: 0, kind: input, shape index: {}]
  %s1 = inlined_call_operand.vmem [shape: f32[5,5,2,4], index: 1, kind: output, shape index: {}]
  %s2 = sld [smem:[#allocation0]]
  $region14: #{tpu_custom_call.1} parent=0
    _
  %s4 = ssub.s32 1, %s2
  %s5 = scalar_select 0, %s4, %s2
  // Predicated region
  $region2: #{tpu_custom_call.1} parent=0 // pred_check
    _
  $region3: #{tpu_custom_call.1} parent=0 // pred_check_branch
    %7 = sbr.rel (0) target = $region5
  $region4: #{tpu_custom_call.1} parent=0 // pred_region
    _
  $region5: #{tpu_custom_call.1} parent=0 // pred_fallthru
    _
  %v8 = vld [vmem:[%s0] sm:$0x3]
  %v9 = vld [vmem:[%s0 + $0x2] sm:$0x3]
  %v10 = vld [vmem:[%s0 + $0x4] sm:$0x3]
  %v11 = vld [vmem:[%s0 + $0x6] sm:$0x3]
  %v12 = vld [vmem:[%s0 + $0x8] sm:$0x3]
  %v13 = vld [vmem:[%s0 + $0xa] sm:$0x3]
  %v14 = vld [vmem:[%s0 + $0xc] sm:$0x3]
  %v15 = vld [vmem:[%s0 + $0xe] sm:$0x3]
  %v16 = vld [vmem:[%s0 + $0x10] sm:$0x3]
  %v17 = vld [vmem:[%s0 + $0x12] sm:$0x3]
  %v18 = vld [vmem:[%s0 + $0x14] sm:$0x3]
  %v19 = vld [vmem:[%s0 + $0x16] sm:$0x3]
  %v20 = vld [vmem:[%s0 + $0x18] sm:$0x3]
  %v21 = vld [vmem:[%s0 + $0x1a] sm:$0x3]
  %v22 = vld [vmem:[%s0 + $0x1c] sm:$0x3]
  %s23 = scalar_lea.vmem %s0, 32
  %v24 = vld [vmem:[%s23] sm:$0x3]
  %v25 = vld [vmem:[%s23 + $0x2] sm:$0x3]
  %v26 = vld [vmem:[%s23 + $0x4] sm:$0x3]
  %v27 = vld [vmem:[%s23 + $0x6] sm:$0x3]
  %v28 = vld [vmem:[%s23 + $0x8] sm:$0x3]
  %v29 = vld [vmem:[%s23 + $0xa] sm:$0x3]
  %v30 = vld [vmem:[%s23 + $0xc] sm:$0x3]
  %v31 = vld [vmem:[%s23 + $0xe] sm:$0x3]
  %v32 = vld [vmem:[%s23 + $0x10] sm:$0x3]
  %v33 = vld [vmem:[%s23 + $0x12] sm:$0x3]
  %v34 = vld [vmem:[%s23 + $0x14] sm:$0x3]
  %v35 = vld [vmem:[%s23 + $0x16] sm:$0x3]
  %v36 = vld [vmem:[%s23 + $0x18] sm:$0x3]
  %v37 = vld [vmem:[%s23 + $0x1a] sm:$0x3]
  %v38 = vld [vmem:[%s23 + $0x1c] sm:$0x3]
  %v39 = vmax.f32 %v8, %v24
  %v40 = vmax.f32 %v9, %v25
  %v41 = vmax.f32 %v10, %v26
  %v42 = vmax.f32 %v11, %v27
  %v43 = vmax.f32 %v12, %v28
  %v44 = vmax.f32 %v13, %v29
  %v45 = vmax.f32 %v14, %v30
  %v46 = vmax.f32 %v15, %v31
  %v47 = vmax.f32 %v16, %v32
  %v48 = vmax.f32 %v17, %v33
  %v49 = vmax.f32 %v18, %v34
  %v50 = vmax.f32 %v19, %v35
  %v51 = vmax.f32 %v20, %v36
  %v52 = vmax.f32 %v21, %v37
  %v53 = vmax.f32 %v22, %v38
  %s54 = scalar_lea.vmem %s0, 64
  %v55 = vld [vmem:[%s54] sm:$0x3]
  %v56 = vld [vmem:[%s54 + $0x2] sm:$0x3]
  %v57 = vld [vmem:[%s54 + $0x4] sm:$0x3]
  %v58 = vld [vmem:[%s54 + $0x6] sm:$0x3]
  %v59 = vld [vmem:[%s54 + $0x8] sm:$0x3]
  %v60 = vld [vmem:[%s54 + $0xa] sm:$0x3]
  %v61 = vld [vmem:[%s54 + $0xc] sm:$0x3]
  %v62 = vld [vmem:[%s54 + $0xe] sm:$0x3]
  %v63 = vld [vmem:[%s54 + $0x10] sm:$0x3]
  %v64 = vld [vmem:[%s54 + $0x12] sm:$0x3]
  %v65 = vld [vmem:[%s54 + $0x14] sm:$0x3]
  %v66 = vld [vmem:[%s54 + $0x16] sm:$0x3]
  %v67 = vld [vmem:[%s54 + $0x18] sm:$0x3]
  %v68 = vld [vmem:[%s54 + $0x1a] sm:$0x3]
  %v69 = vld [vmem:[%s54 + $0x1c] sm:$0x3]
  %v70 = vmax.f32 %v39, %v55
  %v71 = vmax.f32 %v40, %v56
  %v72 = vmax.f32 %v41, %v57
  %v73 = vmax.f32 %v42, %v58
  %v74 = vmax.f32 %v43, %v59
  %v75 = vmax.f32 %v44, %v60
  %v76 = vmax.f32 %v45, %v61
  %v77 = vmax.f32 %v46, %v62
  %v78 = vmax.f32 %v47, %v63
  %v79 = vmax.f32 %v48, %v64
  %v80 = vmax.f32 %v49, %v65
  %v81 = vmax.f32 %v50, %v66
  %v82 = vmax.f32 %v51, %v67
  %v83 = vmax.f32 %v52, %v68
  %v84 = vmax.f32 %v53, %v69
  %s85 = scalar_lea.vmem %s0, 96
  %v86 = vld [vmem:[%s85] sm:$0x3]
  %v87 = vld [vmem:[%s85 + $0x2] sm:$0x3]
  %v88 = vld [vmem:[%s85 + $0x4] sm:$0x3]
  %v89 = vld [vmem:[%s85 + $0x6] sm:$0x3]
  %v90 = vld [vmem:[%s85 + $0x8] sm:$0x3]
  %v91 = vld [vmem:[%s85 + $0xa] sm:$0x3]
  %v92 = vld [vmem:[%s85 + $0xc] sm:$0x3]
  %v93 = vld [vmem:[%s85 + $0xe] sm:$0x3]
  %v94 = vld [vmem:[%s85 + $0x10] sm:$0x3]
  %v95 = vld [vmem:[%s85 + $0x12] sm:$0x3]
  %v96 = vld [vmem:[%s85 + $0x14] sm:$0x3]
  %v97 = vld [vmem:[%s85 + $0x16] sm:$0x3]
  %v98 = vld [vmem:[%s85 + $0x18] sm:$0x3]
  %v99 = vld [vmem:[%s85 + $0x1a] sm:$0x3]
  %v100 = vld [vmem:[%s85 + $0x1c] sm:$0x3]
  %v101 = vmax.f32 %v70, %v86
  %v102 = vmax.f32 %v71, %v87
  %v103 = vmax.f32 %v72, %v88
  %v104 = vmax.f32 %v73, %v89
  %v105 = vmax.f32 %v74, %v90
  %v106 = vmax.f32 %v75, %v91
  %v107 = vmax.f32 %v76, %v92
  %v108 = vmax.f32 %v77, %v93
  %v109 = vmax.f32 %v78, %v94
  %v110 = vmax.f32 %v79, %v95
  %v111 = vmax.f32 %v80, %v96
  %v112 = vmax.f32 %v81, %v97
  %v113 = vmax.f32 %v82, %v98
  %v114 = vmax.f32 %v83, %v99
  %v115 = vmax.f32 %v84, %v100
  %s116 = scalar_lea.vmem %s0, 128
  %v117 = vld [vmem:[%s116] sm:$0x3]
  %v118 = vld [vmem:[%s116 + $0x2] sm:$0x3]
  %v119 = vld [vmem:[%s116 + $0x4] sm:$0x3]
  %v120 = vld [vmem:[%s116 + $0x6] sm:$0x3]
  %v121 = vld [vmem:[%s116 + $0x8] sm:$0x3]
  %v122 = vld [vmem:[%s116 + $0xa] sm:$0x3]
  %v123 = vld [vmem:[%s116 + $0xc] sm:$0x3]
  %v124 = vld [vmem:[%s116 + $0xe] sm:$0x3]
  %v125 = vld [vmem:[%s116 + $0x10] sm:$0x3]
  %v126 = vld [vmem:[%s116 + $0x12] sm:$0x3]
  %v127 = vld [vmem:[%s116 + $0x14] sm:$0x3]
  %v128 = vld [vmem:[%s116 + $0x16] sm:$0x3]
  %v129 = vld [vmem:[%s116 + $0x18] sm:$0x3]
  %v130 = vld [vmem:[%s116 + $0x1a] sm:$0x3]
  %v131 = vld [vmem:[%s116 + $0x1c] sm:$0x3]
  %v132 = vmax.f32 %v101, %v117
  %v133 = vmax.f32 %v102, %v118
  %v134 = vmax.f32 %v103, %v119
  %v135 = vmax.f32 %v104, %v120
  %v136 = vmax.f32 %v105, %v121
  %v137 = vmax.f32 %v106, %v122
  %v138 = vmax.f32 %v107, %v123
  %v139 = vmax.f32 %v108, %v124
  %v140 = vmax.f32 %v109, %v125
  %v141 = vmax.f32 %v110, %v126
  %v142 = vmax.f32 %v111, %v127
  %v143 = vmax.f32 %v112, %v128
  %v144 = vmax.f32 %v113, %v129
  %v145 = vmax.f32 %v114, %v130
  %v146 = vmax.f32 %v115, %v131
  %s147 = scalar_lea.vmem %s0, 160
  %v148 = vld [vmem:[%s147] sm:$0x3]
  %v149 = vld [vmem:[%s147 + $0x2] sm:$0x3]
  %v150 = vld [vmem:[%s147 + $0x4] sm:$0x3]
  %v151 = vld [vmem:[%s147 + $0x6] sm:$0x3]
  %v152 = vld [vmem:[%s147 + $0x8] sm:$0x3]
  %v153 = vld [vmem:[%s147 + $0xa] sm:$0x3]
  %v154 = vld [vmem:[%s147 + $0xc] sm:$0x3]
  %v155 = vld [vmem:[%s147 + $0xe] sm:$0x3]
  %v156 = vld [vmem:[%s147 + $0x10] sm:$0x3]
  %v157 = vld [vmem:[%s147 + $0x12] sm:$0x3]
  %v158 = vld [vmem:[%s147 + $0x14] sm:$0x3]
  %v159 = vld [vmem:[%s147 + $0x16] sm:$0x3]
  %v160 = vld [vmem:[%s147 + $0x18] sm:$0x3]
  %v161 = vld [vmem:[%s147 + $0x1a] sm:$0x3]
  %v162 = vld [vmem:[%s147 + $0x1c] sm:$0x3]
  %v163 = vmax.f32 %v132, %v148
  %v164 = vmax.f32 %v133, %v149
  %v165 = vmax.f32 %v134, %v150
  %v166 = vmax.f32 %v135, %v151
  %v167 = vmax.f32 %v136, %v152
  %v168 = vmax.f32 %v137, %v153
  %v169 = vmax.f32 %v138, %v154
  %v170 = vmax.f32 %v139, %v155
  %v171 = vmax.f32 %v140, %v156
  %v172 = vmax.f32 %v141, %v157
  %v173 = vmax.f32 %v142, %v158
  %v174 = vmax.f32 %v143, %v159
  %v175 = vmax.f32 %v144, %v160
  %v176 = vmax.f32 %v145, %v161
  %v177 = vmax.f32 %v146, %v162
  %s178 = scalar_lea.vmem %s0, 192
  %v179 = vld [vmem:[%s178] sm:$0x3]
  %v180 = vld [vmem:[%s178 + $0x2] sm:$0x3]
  %v181 = vld [vmem:[%s178 + $0x4] sm:$0x3]
  %v182 = vld [vmem:[%s178 + $0x6] sm:$0x3]
  %v183 = vld [vmem:[%s178 + $0x8] sm:$0x3]
  %v184 = vld [vmem:[%s178 + $0xa] sm:$0x3]
  %v185 = vld [vmem:[%s178 + $0xc] sm:$0x3]
  %v186 = vld [vmem:[%s178 + $0xe] sm:$0x3]
  %v187 = vld [vmem:[%s178 + $0x10] sm:$0x3]
  %v188 = vld [vmem:[%s178 + $0x12] sm:$0x3]
  %v189 = vld [vmem:[%s178 + $0x14] sm:$0x3]
  %v190 = vld [vmem:[%s178 + $0x16] sm:$0x3]
  %v191 = vld [vmem:[%s178 + $0x18] sm:$0x3]
  %v192 = vld [vmem:[%s178 + $0x1a] sm:$0x3]
  %v193 = vld [vmem:[%s178 + $0x1c] sm:$0x3]
  %v194 = vmax.f32 %v163, %v179
  %v195 = vmax.f32 %v164, %v180
  %v196 = vmax.f32 %v165, %v181
  %v197 = vmax.f32 %v166, %v182
  %v198 = vmax.f32 %v167, %v183
  %v199 = vmax.f32 %v168, %v184
  %v200 = vmax.f32 %v169, %v185
  %v201 = vmax.f32 %v170, %v186
  %v202 = vmax.f32 %v171, %v187
  %v203 = vmax.f32 %v172, %v188
  %v204 = vmax.f32 %v173, %v189
  %v205 = vmax.f32 %v174, %v190
  %v206 = vmax.f32 %v175, %v191
  %v207 = vmax.f32 %v176, %v192
  %v208 = vmax.f32 %v177, %v193
  %v209 = vmax.f32 %v194, %v195
  %v210 = vmax.f32 %v209, %v196
  %v211 = vmax.f32 %v210, %v197
  %v212 = vmax.f32 %v211, %v198
  %v213 = vmax.f32 %v212, %v199
  %v214 = vmax.f32 %v213, %v200
  %v215 = vmax.f32 %v214, 0.0
  %vm216 = vcmask 25600
  %217 = vst.msk [vmem:[%s1] sm:$0x3] %vm216, %v215
  %v218 = vmax.f32 %v196, %v197
  %v219 = vmax.f32 %v218, %v198
  %v220 = vmax.f32 %v219, %v199
  %v221 = vmax.f32 %v220, %v200
  %v222 = vmax.f32 %v221, %v201
  %v223 = vmax.f32 %v222, %v202
  %v224 = vmax.f32 %v223, 0.0
  %s225 = scalar_lea.vmem %s1, 2
  %226 = vst.msk [vmem:[%s225] sm:$0x3] %vm216, %v224
  %v227 = vmax.f32 %v198, %v199
  %v228 = vmax.f32 %v227, %v200
  %v229 = vmax.f32 %v228, %v201
  %v230 = vmax.f32 %v229, %v202
  %v231 = vmax.f32 %v230, %v203
  %v232 = vmax.f32 %v231, %v204
  %v233 = vmax.f32 %v232, 0.0
  %s234 = scalar_lea.vmem %s1, 4
  %235 = vst.msk [vmem:[%s234] sm:$0x3] %vm216, %v233
  %v236 = vmax.f32 %v200, %v201
  %v237 = vmax.f32 %v236, %v202
  %v238 = vmax.f32 %v237, %v203
  %v239 = vmax.f32 %v238, %v204
  %v240 = vmax.f32 %v239, %v205
  %v241 = vmax.f32 %v240, %v206
  %v242 = vmax.f32 %v241, 0.0
  %s243 = scalar_lea.vmem %s1, 6
  %244 = vst.msk [vmem:[%s243] sm:$0x3] %vm216, %v242
  %v245 = vmax.f32 %v202, %v203
  %v246 = vmax.f32 %v245, %v204
  %v247 = vmax.f32 %v246, %v205
  %v248 = vmax.f32 %v247, %v206
  %v249 = vmax.f32 %v248, %v207
  %v250 = vmax.f32 %v249, %v208
  %v251 = vmax.f32 %v250, 0.0
  %s252 = scalar_lea.vmem %s1, 8
  %253 = vst.msk [vmem:[%s252] sm:$0x3] %vm216, %v251
  %v254 = vld [vmem:[%s54] sm:$0x3]
  %v255 = vld [vmem:[%s54 + $0x2] sm:$0x3]
  %v256 = vld [vmem:[%s54 + $0x4] sm:$0x3]
  %v257 = vld [vmem:[%s54 + $0x6] sm:$0x3]
  %v258 = vld [vmem:[%s54 + $0x8] sm:$0x3]
  %v259 = vld [vmem:[%s54 + $0xa] sm:$0x3]
  %v260 = vld [vmem:[%s54 + $0xc] sm:$0x3]
  %v261 = vld [vmem:[%s54 + $0xe] sm:$0x3]
  %v262 = vld [vmem:[%s54 + $0x10] sm:$0x3]
  %v263 = vld [vmem:[%s54 + $0x12] sm:$0x3]
  %v264 = vld [vmem:[%s54 + $0x14] sm:$0x3]
  %v265 = vld [vmem:[%s54 + $0x16] sm:$0x3]
  %v266 = vld [vmem:[%s54 + $0x18] sm:$0x3]
  %v267 = vld [vmem:[%s54 + $0x1a] sm:$0x3]
  %v268 = vld [vmem:[%s54 + $0x1c] sm:$0x3]
  %v269 = vld [vmem:[%s85] sm:$0x3]
  %v270 = vld [vmem:[%s85 + $0x2] sm:$0x3]
  %v271 = vld [vmem:[%s85 + $0x4] sm:$0x3]
  %v272 = vld [vmem:[%s85 + $0x6] sm:$0x3]
  %v273 = vld [vmem:[%s85 + $0x8] sm:$0x3]
  %v274 = vld [vmem:[%s85 + $0xa] sm:$0x3]
  %v275 = vld [vmem:[%s85 + $0xc] sm:$0x3]
  %v276 = vld [vmem:[%s85 + $0xe] sm:$0x3]
  %v277 = vld [vmem:[%s85 + $0x10] sm:$0x3]
  %v278 = vld [vmem:[%s85 + $0x12] sm:$0x3]
  %v279 = vld [vmem:[%s85 + $0x14] sm:$0x3]
  %v280 = vld [vmem:[%s85 + $0x16] sm:$0x3]
  %v281 = vld [vmem:[%s85 + $0x18] sm:$0x3]
  %v282 = vld [vmem:[%s85 + $0x1a] sm:$0x3]
  %v283 = vld [vmem:[%s85 + $0x1c] sm:$0x3]
  %v284 = vmax.f32 %v254, %v269
  %v285 = vmax.f32 %v255, %v270
  %v286 = vmax.f32 %v256, %v271
  %v287 = vmax.f32 %v257, %v272
  %v288 = vmax.f32 %v258, %v273
  %v289 = vmax.f32 %v259, %v274
  %v290 = vmax.f32 %v260, %v275
  %v291 = vmax.f32 %v261, %v276
  %v292 = vmax.f32 %v262, %v277
  %v293 = vmax.f32 %v263, %v278
  %v294 = vmax.f32 %v264, %v279
  %v295 = vmax.f32 %v265, %v280
  %v296 = vmax.f32 %v266, %v281
  %v297 = vmax.f32 %v267, %v282
  %v298 = vmax.f32 %v268, %v283
  %v299 = vld [vmem:[%s116] sm:$0x3]
  %v300 = vld [vmem:[%s116 + $0x2] sm:$0x3]
  %v301 = vld [vmem:[%s116 + $0x4] sm:$0x3]
  %v302 = vld [vmem:[%s116 + $0x6] sm:$0x3]
  %v303 = vld [vmem:[%s116 + $0x8] sm:$0x3]
  %v304 = vld [vmem:[%s116 + $0xa] sm:$0x3]
  %v305 = vld [vmem:[%s116 + $0xc] sm:$0x3]
  %v306 = vld [vmem:[%s116 + $0xe] sm:$0x3]
  %v307 = vld [vmem:[%s116 + $0x10] sm:$0x3]
  %v308 = vld [vmem:[%s116 + $0x12] sm:$0x3]
  %v309 = vld [vmem:[%s116 + $0x14] sm:$0x3]
  %v310 = vld [vmem:[%s116 + $0x16] sm:$0x3]
  %v311 = vld [vmem:[%s116 + $0x18] sm:$0x3]
  %v312 = vld [vmem:[%s116 + $0x1a] sm:$0x3]
  %v313 = vld [vmem:[%s116 + $0x1c] sm:$0x3]
  %v314 = vmax.f32 %v284, %v299
  %v315 = vmax.f32 %v285, %v300
  %v316 = vmax.f32 %v286, %v301
  %v317 = vmax.f32 %v287, %v302
  %v318 = vmax.f32 %v288, %v303
  %v319 = vmax.f32 %v289, %v304
  %v320 = vmax.f32 %v290, %v305
  %v321 = vmax.f32 %v291, %v306
  %v322 = vmax.f32 %v292, %v307
  %v323 = vmax.f32 %v293, %v308
  %v324 = vmax.f32 %v294, %v309
  %v325 = vmax.f32 %v295, %v310
  %v326 = vmax.f32 %v296, %v311
  %v327 = vmax.f32 %v297, %v312
  %v328 = vmax.f32 %v298, %v313
  %v329 = vld [vmem:[%s147] sm:$0x3]
  %v330 = vld [vmem:[%s147 + $0x2] sm:$0x3]
  %v331 = vld [vmem:[%s147 + $0x4] sm:$0x3]
  %v332 = vld [vmem:[%s147 + $0x6] sm:$0x3]
  %v333 = vld [vmem:[%s147 + $0x8] sm:$0x3]
  %v334 = vld [vmem:[%s147 + $0xa] sm:$0x3]
  %v335 = vld [vmem:[%s147 + $0xc] sm:$0x3]
  %v336 = vld [vmem:[%s147 + $0xe] sm:$0x3]
  %v337 = vld [vmem:[%s147 + $0x10] sm:$0x3]
  %v338 = vld [vmem:[%s147 + $0x12] sm:$0x3]
  %v339 = vld [vmem:[%s147 + $0x14] sm:$0x3]
  %v340 = vld [vmem:[%s147 + $0x16] sm:$0x3]
  %v341 = vld [vmem:[%s147 + $0x18] sm:$0x3]
  %v342 = vld [vmem:[%s147 + $0x1a] sm:$0x3]
  %v343 = vld [vmem:[%s147 + $0x1c] sm:$0x3]
  %v344 = vmax.f32 %v314, %v329
  %v345 = vmax.f32 %v315, %v330
  %v346 = vmax.f32 %v316, %v331
  %v347 = vmax.f32 %v317, %v332
  %v348 = vmax.f32 %v318, %v333
  %v349 = vmax.f32 %v319, %v334
  %v350 = vmax.f32 %v320, %v335
  %v351 = vmax.f32 %v321, %v336
  %v352 = vmax.f32 %v322, %v337
  %v353 = vmax.f32 %v323, %v338
  %v354 = vmax.f32 %v324, %v339
  %v355 = vmax.f32 %v325, %v340
  %v356 = vmax.f32 %v326, %v341
  %v357 = vmax.f32 %v327, %v342
  %v358 = vmax.f32 %v328, %v343
  %v359 = vld [vmem:[%s178] sm:$0x3]
  %v360 = vld [vmem:[%s178 + $0x2] sm:$0x3]
  %v361 = vld [vmem:[%s178 + $0x4] sm:$0x3]
  %v362 = vld [vmem:[%s178 + $0x6] sm:$0x3]
  %v363 = vld [vmem:[%s178 + $0x8] sm:$0x3]
  %v364 = vld [vmem:[%s178 + $0xa] sm:$0x3]
  %v365 = vld [vmem:[%s178 + $0xc] sm:$0x3]
  %v366 = vld [vmem:[%s178 + $0xe] sm:$0x3]
  %v367 = vld [vmem:[%s178 + $0x10] sm:$0x3]
  %v368 = vld [vmem:[%s178 + $0x12] sm:$0x3]
  %v369 = vld [vmem:[%s178 + $0x14] sm:$0x3]
  %v370 = vld [vmem:[%s178 + $0x16] sm:$0x3]
  %v371 = vld [vmem:[%s178 + $0x18] sm:$0x3]
  %v372 = vld [vmem:[%s178 + $0x1a] sm:$0x3]
  %v373 = vld [vmem:[%s178 + $0x1c] sm:$0x3]
  %v374 = vmax.f32 %v344, %v359
  %v375 = vmax.f32 %v345, %v360
  %v376 = vmax.f32 %v346, %v361
  %v377 = vmax.f32 %v347, %v362
  %v378 = vmax.f32 %v348, %v363
  %v379 = vmax.f32 %v349, %v364
  %v380 = vmax.f32 %v350, %v365
  %v381 = vmax.f32 %v351, %v366
  %v382 = vmax.f32 %v352, %v367
  %v383 = vmax.f32 %v353, %v368
  %v384 = vmax.f32 %v354, %v369
  %v385 = vmax.f32 %v355, %v370
  %v386 = vmax.f32 %v356, %v371
  %v387 = vmax.f32 %v357, %v372
  %v388 = vmax.f32 %v358, %v373
  %s389 = scalar_lea.vmem %s0, 224
  %v390 = vld [vmem:[%s389] sm:$0x3]
  %v391 = vld [vmem:[%s389 + $0x2] sm:$0x3]
  %v392 = vld [vmem:[%s389 + $0x4] sm:$0x3]
  %v393 = vld [vmem:[%s389 + $0x6] sm:$0x3]
  %v394 = vld [vmem:[%s389 + $0x8] sm:$0x3]
  %v395 = vld [vmem:[%s389 + $0xa] sm:$0x3]
  %v396 = vld [vmem:[%s389 + $0xc] sm:$0x3]
  %v397 = vld [vmem:[%s389 + $0xe] sm:$0x3]
  %v398 = vld [vmem:[%s389 + $0x10] sm:$0x3]
  %v399 = vld [vmem:[%s389 + $0x12] sm:$0x3]
  %v400 = vld [vmem:[%s389 + $0x14] sm:$0x3]
  %v401 = vld [vmem:[%s389 + $0x16] sm:$0x3]
  %v402 = vld [vmem:[%s389 + $0x18] sm:$0x3]
  %v403 = vld [vmem:[%s389 + $0x1a] sm:$0x3]
  %v404 = vld [vmem:[%s389 + $0x1c] sm:$0x3]
  %v405 = vmax.f32 %v374, %v390
  %v406 = vmax.f32 %v375, %v391
  %v407 = vmax.f32 %v376, %v392
  %v408 = vmax.f32 %v377, %v393
  %v409 = vmax.f32 %v378, %v394
  %v410 = vmax.f32 %v379, %v395
  %v411 = vmax.f32 %v380, %v396
  %v412 = vmax.f32 %v381, %v397
  %v413 = vmax.f32 %v382, %v398
  %v414 = vmax.f32 %v383, %v399
  %v415 = vmax.f32 %v384, %v400
  %v416 = vmax.f32 %v385, %v401
  %v417 = vmax.f32 %v386, %v402
  %v418 = vmax.f32 %v387, %v403
  %v419 = vmax.f32 %v388, %v404
  %s420 = scalar_lea.vmem %s0, 256
  %v421 = vld [vmem:[%s420] sm:$0x3]
  %v422 = vld [vmem:[%s420 + $0x2] sm:$0x3]
  %v423 = vld [vmem:[%s420 + $0x4] sm:$0x3]
  %v424 = vld [vmem:[%s420 + $0x6] sm:$0x3]
  %v425 = vld [vmem:[%s420 + $0x8] sm:$0x3]
  %v426 = vld [vmem:[%s420 + $0xa] sm:$0x3]
  %v427 = vld [vmem:[%s420 + $0xc] sm:$0x3]
  %v428 = vld [vmem:[%s420 + $0xe] sm:$0x3]
  %v429 = vld [vmem:[%s420 + $0x10] sm:$0x3]
  %v430 = vld [vmem:[%s420 + $0x12] sm:$0x3]
  %v431 = vld [vmem:[%s420 + $0x14] sm:$0x3]
  %v432 = vld [vmem:[%s420 + $0x16] sm:$0x3]
  %v433 = vld [vmem:[%s420 + $0x18] sm:$0x3]
  %v434 = vld [vmem:[%s420 + $0x1a] sm:$0x3]
  %v435 = vld [vmem:[%s420 + $0x1c] sm:$0x3]
  %v436 = vmax.f32 %v405, %v421
  %v437 = vmax.f32 %v406, %v422
  %v438 = vmax.f32 %v407, %v423
  %v439 = vmax.f32 %v408, %v424
  %v440 = vmax.f32 %v409, %v425
  %v441 = vmax.f32 %v410, %v426
  %v442 = vmax.f32 %v411, %v427
  %v443 = vmax.f32 %v412, %v428
  %v444 = vmax.f32 %v413, %v429
  %v445 = vmax.f32 %v414, %v430
  %v446 = vmax.f32 %v415, %v431
  %v447 = vmax.f32 %v416, %v432
  %v448 = vmax.f32 %v417, %v433
  %v449 = vmax.f32 %v418, %v434
  %v450 = vmax.f32 %v419, %v435
  %v451 = vmax.f32 %v436, %v437
  %v452 = vmax.f32 %v451, %v438
  %v453 = vmax.f32 %v452, %v439
  %v454 = vmax.f32 %v453, %v440
  %v455 = vmax.f32 %v454, %v441
  %v456 = vmax.f32 %v455, %v442
  %v457 = vmax.f32 %v456, 0.0
  %s458 = scalar_lea.vmem %s1, 10
  %459 = vst.msk [vmem:[%s458] sm:$0x3] %vm216, %v457
  %v460 = vmax.f32 %v438, %v439
  %v461 = vmax.f32 %v460, %v440
  %v462 = vmax.f32 %v461, %v441
  %v463 = vmax.f32 %v462, %v442
  %v464 = vmax.f32 %v463, %v443
  %v465 = vmax.f32 %v464, %v444
  %v466 = vmax.f32 %v465, 0.0
  %s467 = scalar_lea.vmem %s1, 12
  %468 = vst.msk [vmem:[%s467] sm:$0x3] %vm216, %v466
  %v469 = vmax.f32 %v440, %v441
  %v470 = vmax.f32 %v469, %v442
  %v471 = vmax.f32 %v470, %v443
  %v472 = vmax.f32 %v471, %v444
  %v473 = vmax.f32 %v472, %v445
  %v474 = vmax.f32 %v473, %v446
  %v475 = vmax.f32 %v474, 0.0
  %s476 = scalar_lea.vmem %s1, 14
  %477 = vst.msk [vmem:[%s476] sm:$0x3] %vm216, %v475
  %v478 = vmax.f32 %v442, %v443
  %v479 = vmax.f32 %v478, %v444
  %v480 = vmax.f32 %v479, %v445
  %v481 = vmax.f32 %v480, %v446
  %v482 = vmax.f32 %v481, %v447
  %v483 = vmax.f32 %v482, %v448
  %v484 = vmax.f32 %v483, 0.0
  %s485 = scalar_lea.vmem %s1, 16
  %486 = vst.msk [vmem:[%s485] sm:$0x3] %vm216, %v484
  %v487 = vmax.f32 %v444, %v445
  %v488 = vmax.f32 %v487, %v446
  %v489 = vmax.f32 %v488, %v447
  %v490 = vmax.f32 %v489, %v448
  %v491 = vmax.f32 %v490, %v449
  %v492 = vmax.f32 %v491, %v450
  %v493 = vmax.f32 %v492, 0.0
  %s494 = scalar_lea.vmem %s1, 18
  %495 = vst.msk [vmem:[%s494] sm:$0x3] %vm216, %v493
  %v496 = vld [vmem:[%s116] sm:$0x3]
  %v497 = vld [vmem:[%s116 + $0x2] sm:$0x3]
  %v498 = vld [vmem:[%s116 + $0x4] sm:$0x3]
  %v499 = vld [vmem:[%s116 + $0x6] sm:$0x3]
  %v500 = vld [vmem:[%s116 + $0x8] sm:$0x3]
  %v501 = vld [vmem:[%s116 + $0xa] sm:$0x3]
  %v502 = vld [vmem:[%s116 + $0xc] sm:$0x3]
  %v503 = vld [vmem:[%s116 + $0xe] sm:$0x3]
  %v504 = vld [vmem:[%s116 + $0x10] sm:$0x3]
  %v505 = vld [vmem:[%s116 + $0x12] sm:$0x3]
  %v506 = vld [vmem:[%s116 + $0x14] sm:$0x3]
  %v507 = vld [vmem:[%s116 + $0x16] sm:$0x3]
  %v508 = vld [vmem:[%s116 + $0x18] sm:$0x3]
  %v509 = vld [vmem:[%s116 + $0x1a] sm:$0x3]
  %v510 = vld [vmem:[%s116 + $0x1c] sm:$0x3]
  %v511 = vld [vmem:[%s147] sm:$0x3]
  %v512 = vld [vmem:[%s147 + $0x2] sm:$0x3]
  %v513 = vld [vmem:[%s147 + $0x4] sm:$0x3]
  %v514 = vld [vmem:[%s147 + $0x6] sm:$0x3]
  %v515 = vld [vmem:[%s147 + $0x8] sm:$0x3]
  %v516 = vld [vmem:[%s147 + $0xa] sm:$0x3]
  %v517 = vld [vmem:[%s147 + $0xc] sm:$0x3]
  %v518 = vld [vmem:[%s147 + $0xe] sm:$0x3]
  %v519 = vld [vmem:[%s147 + $0x10] sm:$0x3]
  %v520 = vld [vmem:[%s147 + $0x12] sm:$0x3]
  %v521 = vld [vmem:[%s147 + $0x14] sm:$0x3]
  %v522 = vld [vmem:[%s147 + $0x16] sm:$0x3]
  %v523 = vld [vmem:[%s147 + $0x18] sm:$0x3]
  %v524 = vld [vmem:[%s147 + $0x1a] sm:$0x3]
  %v525 = vld [vmem:[%s147 + $0x1c] sm:$0x3]
  %v526 = vmax.f32 %v496, %v511
  %v527 = vmax.f32 %v497, %v512
  %v528 = vmax.f32 %v498, %v513
  %v529 = vmax.f32 %v499, %v514
  %v530 = vmax.f32 %v500, %v515
  %v531 = vmax.f32 %v501, %v516
  %v532 = vmax.f32 %v502, %v517
  %v533 = vmax.f32 %v503, %v518
  %v534 = vmax.f32 %v504, %v519
  %v535 = vmax.f32 %v505, %v520
  %v536 = vmax.f32 %v506, %v521
  %v537 = vmax.f32 %v507, %v522
  %v538 = vmax.f32 %v508, %v523
  %v539 = vmax.f32 %v509, %v524
  %v540 = vmax.f32 %v510, %v525
  %v541 = vld [vmem:[%s178] sm:$0x3]
  %v542 = vld [vmem:[%s178 + $0x2] sm:$0x3]
  %v543 = vld [vmem:[%s178 + $0x4] sm:$0x3]
  %v544 = vld [vmem:[%s178 + $0x6] sm:$0x3]
  %v545 = vld [vmem:[%s178 + $0x8] sm:$0x3]
  %v546 = vld [vmem:[%s178 + $0xa] sm:$0x3]
  %v547 = vld [vmem:[%s178 + $0xc] sm:$0x3]
  %v548 = vld [vmem:[%s178 + $0xe] sm:$0x3]
  %v549 = vld [vmem:[%s178 + $0x10] sm:$0x3]
  %v550 = vld [vmem:[%s178 + $0x12] sm:$0x3]
  %v551 = vld [vmem:[%s178 + $0x14] sm:$0x3]
  %v552 = vld [vmem:[%s178 + $0x16] sm:$0x3]
  %v553 = vld [vmem:[%s178 + $0x18] sm:$0x3]
  %v554 = vld [vmem:[%s178 + $0x1a] sm:$0x3]
  %v555 = vld [vmem:[%s178 + $0x1c] sm:$0x3]
  %v556 = vmax.f32 %v526, %v541
  %v557 = vmax.f32 %v527, %v542
  %v558 = vmax.f32 %v528, %v543
  %v559 = vmax.f32 %v529, %v544
  %v560 = vmax.f32 %v530, %v545
  %v561 = vmax.f32 %v531, %v546
  %v562 = vmax.f32 %v532, %v547
  %v563 = vmax.f32 %v533, %v548
  %v564 = vmax.f32 %v534, %v549
  %v565 = vmax.f32 %v535, %v550
  %v566 = vmax.f32 %v536, %v551
  %v567 = vmax.f32 %v537, %v552
  %v568 = vmax.f32 %v538, %v553
  %v569 = vmax.f32 %v539, %v554
  %v570 = vmax.f32 %v540, %v555
  %v571 = vld [vmem:[%s389] sm:$0x3]
  %v572 = vld [vmem:[%s389 + $0x2] sm:$0x3]
  %v573 = vld [vmem:[%s389 + $0x4] sm:$0x3]
  %v574 = vld [vmem:[%s389 + $0x6] sm:$0x3]
  %v575 = vld [vmem:[%s389 + $0x8] sm:$0x3]
  %v576 = vld [vmem:[%s389 + $0xa] sm:$0x3]
  %v577 = vld [vmem:[%s389 + $0xc] sm:$0x3]
  %v578 = vld [vmem:[%s389 + $0xe] sm:$0x3]
  %v579 = vld [vmem:[%s389 + $0x10] sm:$0x3]
  %v580 = vld [vmem:[%s389 + $0x12] sm:$0x3]
  %v581 = vld [vmem:[%s389 + $0x14] sm:$0x3]
  %v582 = vld [vmem:[%s389 + $0x16] sm:$0x3]
  %v583 = vld [vmem:[%s389 + $0x18] sm:$0x3]
  %v584 = vld [vmem:[%s389 + $0x1a] sm:$0x3]
  %v585 = vld [vmem:[%s389 + $0x1c] sm:$0x3]
  %v586 = vmax.f32 %v556, %v571
  %v587 = vmax.f32 %v557, %v572
  %v588 = vmax.f32 %v558, %v573
  %v589 = vmax.f32 %v559, %v574
  %v590 = vmax.f32 %v560, %v575
  %v591 = vmax.f32 %v561, %v576
  %v592 = vmax.f32 %v562, %v577
  %v593 = vmax.f32 %v563, %v578
  %v594 = vmax.f32 %v564, %v579
  %v595 = vmax.f32 %v565, %v580
  %v596 = vmax.f32 %v566, %v581
  %v597 = vmax.f32 %v567, %v582
  %v598 = vmax.f32 %v568, %v583
  %v599 = vmax.f32 %v569, %v584
  %v600 = vmax.f32 %v570, %v585
  %v601 = vld [vmem:[%s420] sm:$0x3]
  %v602 = vld [vmem:[%s420 + $0x2] sm:$0x3]
  %v603 = vld [vmem:[%s420 + $0x4] sm:$0x3]
  %v604 = vld [vmem:[%s420 + $0x6] sm:$0x3]
  %v605 = vld [vmem:[%s420 + $0x8] sm:$0x3]
  %v606 = vld [vmem:[%s420 + $0xa] sm:$0x3]
  %v607 = vld [vmem:[%s420 + $0xc] sm:$0x3]
  %v608 = vld [vmem:[%s420 + $0xe] sm:$0x3]
  %v609 = vld [vmem:[%s420 + $0x10] sm:$0x3]
  %v610 = vld [vmem:[%s420 + $0x12] sm:$0x3]
  %v611 = vld [vmem:[%s420 + $0x14] sm:$0x3]
  %v612 = vld [vmem:[%s420 + $0x16] sm:$0x3]
  %v613 = vld [vmem:[%s420 + $0x18] sm:$0x3]
  %v614 = vld [vmem:[%s420 + $0x1a] sm:$0x3]
  %v615 = vld [vmem:[%s420 + $0x1c] sm:$0x3]
  %v616 = vmax.f32 %v586, %v601
  %v617 = vmax.f32 %v587, %v602
  %v618 = vmax.f32 %v588, %v603
  %v619 = vmax.f32 %v589, %v604
  %v620 = vmax.f32 %v590, %v605
  %v621 = vmax.f32 %v591, %v606
  %v622 = vmax.f32 %v592, %v607
  %v623 = vmax.f32 %v593, %v608
  %v624 = vmax.f32 %v594, %v609
  %v625 = vmax.f32 %v595, %v610
  %v626 = vmax.f32 %v596, %v611
  %v627 = vmax.f32 %v597, %v612
  %v628 = vmax.f32 %v598, %v613
  %v629 = vmax.f32 %v599, %v614
  %v630 = vmax.f32 %v600, %v615
  %s631 = scalar_lea.vmem %s0, 288
  %v632 = vld [vmem:[%s631] sm:$0x3]
  %v633 = vld [vmem:[%s631 + $0x2] sm:$0x3]
  %v634 = vld [vmem:[%s631 + $0x4] sm:$0x3]
  %v635 = vld [vmem:[%s631 + $0x6] sm:$0x3]
  %v636 = vld [vmem:[%s631 + $0x8] sm:$0x3]
  %v637 = vld [vmem:[%s631 + $0xa] sm:$0x3]
  %v638 = vld [vmem:[%s631 + $0xc] sm:$0x3]
  %v639 = vld [vmem:[%s631 + $0xe] sm:$0x3]
  %v640 = vld [vmem:[%s631 + $0x10] sm:$0x3]
  %v641 = vld [vmem:[%s631 + $0x12] sm:$0x3]
  %v642 = vld [vmem:[%s631 + $0x14] sm:$0x3]
  %v643 = vld [vmem:[%s631 + $0x16] sm:$0x3]
  %v644 = vld [vmem:[%s631 + $0x18] sm:$0x3]
  %v645 = vld [vmem:[%s631 + $0x1a] sm:$0x3]
  %v646 = vld [vmem:[%s631 + $0x1c] sm:$0x3]
  %v647 = vmax.f32 %v616, %v632
  %v648 = vmax.f32 %v617, %v633
  %v649 = vmax.f32 %v618, %v634
  %v650 = vmax.f32 %v619, %v635
  %v651 = vmax.f32 %v620, %v636
  %v652 = vmax.f32 %v621, %v637
  %v653 = vmax.f32 %v622, %v638
  %v654 = vmax.f32 %v623, %v639
  %v655 = vmax.f32 %v624, %v640
  %v656 = vmax.f32 %v625, %v641
  %v657 = vmax.f32 %v626, %v642
  %v658 = vmax.f32 %v627, %v643
  %v659 = vmax.f32 %v628, %v644
  %v660 = vmax.f32 %v629, %v645
  %v661 = vmax.f32 %v630, %v646
  %s662 = scalar_lea.vmem %s0, 320
  %v663 = vld [vmem:[%s662] sm:$0x3]
  %v664 = vld [vmem:[%s662 + $0x2] sm:$0x3]
  %v665 = vld [vmem:[%s662 + $0x4] sm:$0x3]
  %v666 = vld [vmem:[%s662 + $0x6] sm:$0x3]
  %v667 = vld [vmem:[%s662 + $0x8] sm:$0x3]
  %v668 = vld [vmem:[%s662 + $0xa] sm:$0x3]
  %v669 = vld [vmem:[%s662 + $0xc] sm:$0x3]
  %v670 = vld [vmem:[%s662 + $0xe] sm:$0x3]
  %v671 = vld [vmem:[%s662 + $0x10] sm:$0x3]
  %v672 = vld [vmem:[%s662 + $0x12] sm:$0x3]
  %v673 = vld [vmem:[%s662 + $0x14] sm:$0x3]
  %v674 = vld [vmem:[%s662 + $0x16] sm:$0x3]
  %v675 = vld [vmem:[%s662 + $0x18] sm:$0x3]
  %v676 = vld [vmem:[%s662 + $0x1a] sm:$0x3]
  %v677 = vld [vmem:[%s662 + $0x1c] sm:$0x3]
  %v678 = vmax.f32 %v647, %v663
  %v679 = vmax.f32 %v648, %v664
  %v680 = vmax.f32 %v649, %v665
  %v681 = vmax.f32 %v650, %v666
  %v682 = vmax.f32 %v651, %v667
  %v683 = vmax.f32 %v652, %v668
  %v684 = vmax.f32 %v653, %v669
  %v685 = vmax.f32 %v654, %v670
  %v686 = vmax.f32 %v655, %v671
  %v687 = vmax.f32 %v656, %v672
  %v688 = vmax.f32 %v657, %v673
  %v689 = vmax.f32 %v658, %v674
  %v690 = vmax.f32 %v659, %v675
  %v691 = vmax.f32 %v660, %v676
  %v692 = vmax.f32 %v661, %v677
  %v693 = vmax.f32 %v678, %v679
  %v694 = vmax.f32 %v693, %v680
  %v695 = vmax.f32 %v694, %v681
  %v696 = vmax.f32 %v695, %v682
  %v697 = vmax.f32 %v696, %v683
  %v698 = vmax.f32 %v697, %v684
  %v699 = vmax.f32 %v698, 0.0
  %s700 = scalar_lea.vmem %s1, 20
  %701 = vst.msk [vmem:[%s700] sm:$0x3] %vm216, %v699
  %v702 = vmax.f32 %v680, %v681
  %v703 = vmax.f32 %v702, %v682
  %v704 = vmax.f32 %v703, %v683
  %v705 = vmax.f32 %v704, %v684
  %v706 = vmax.f32 %v705, %v685
  %v707 = vmax.f32 %v706, %v686
  %v708 = vmax.f32 %v707, 0.0
  %s709 = scalar_lea.vmem %s1, 22
  %710 = vst.msk [vmem:[%s709] sm:$0x3] %vm216, %v708
  %v711 = vmax.f32 %v682, %v683
  %v712 = vmax.f32 %v711, %v684
  %v713 = vmax.f32 %v712, %v685
  %v714 = vmax.f32 %v713, %v686
  %v715 = vmax.f32 %v714, %v687
  %v716 = vmax.f32 %v715, %v688
  %v717 = vmax.f32 %v716, 0.0
  %s718 = scalar_lea.vmem %s1, 24
  %719 = vst.msk [vmem:[%s718] sm:$0x3] %vm216, %v717
  %v720 = vmax.f32 %v684, %v685
  %v721 = vmax.f32 %v720, %v686
  %v722 = vmax.f32 %v721, %v687
  %v723 = vmax.f32 %v722, %v688
  %v724 = vmax.f32 %v723, %v689
  %v725 = vmax.f32 %v724, %v690
  %v726 = vmax.f32 %v725, 0.0
  %s727 = scalar_lea.vmem %s1, 26
  %728 = vst.msk [vmem:[%s727] sm:$0x3] %vm216, %v726
  %v729 = vmax.f32 %v686, %v687
  %v730 = vmax.f32 %v729, %v688
  %v731 = vmax.f32 %v730, %v689
  %v732 = vmax.f32 %v731, %v690
  %v733 = vmax.f32 %v732, %v691
  %v734 = vmax.f32 %v733, %v692
  %v735 = vmax.f32 %v734, 0.0
  %s736 = scalar_lea.vmem %s1, 28
  %737 = vst.msk [vmem:[%s736] sm:$0x3] %vm216, %v735
  %v738 = vld [vmem:[%s178] sm:$0x3]
  %v739 = vld [vmem:[%s178 + $0x2] sm:$0x3]
  %v740 = vld [vmem:[%s178 + $0x4] sm:$0x3]
  %v741 = vld [vmem:[%s178 + $0x6] sm:$0x3]
  %v742 = vld [vmem:[%s178 + $0x8] sm:$0x3]
  %v743 = vld [vmem:[%s178 + $0xa] sm:$0x3]
  %v744 = vld [vmem:[%s178 + $0xc] sm:$0x3]
  %v745 = vld [vmem:[%s178 + $0xe] sm:$0x3]
  %v746 = vld [vmem:[%s178 + $0x10] sm:$0x3]
  %v747 = vld [vmem:[%s178 + $0x12] sm:$0x3]
  %v748 = vld [vmem:[%s178 + $0x14] sm:$0x3]
  %v749 = vld [vmem:[%s178 + $0x16] sm:$0x3]
  %v750 = vld [vmem:[%s178 + $0x18] sm:$0x3]
  %v751 = vld [vmem:[%s178 + $0x1a] sm:$0x3]
  %v752 = vld [vmem:[%s178 + $0x1c] sm:$0x3]
  %v753 = vld [vmem:[%s389] sm:$0x3]
  %v754 = vld [vmem:[%s389 + $0x2] sm:$0x3]
  %v755 = vld [vmem:[%s389 + $0x4] sm:$0x3]
  %v756 = vld [vmem:[%s389 + $0x6] sm:$0x3]
  %v757 = vld [vmem:[%s389 + $0x8] sm:$0x3]
  %v758 = vld [vmem:[%s389 + $0xa] sm:$0x3]
  %v759 = vld [vmem:[%s389 + $0xc] sm:$0x3]
  %v760 = vld [vmem:[%s389 + $0xe] sm:$0x3]
  %v761 = vld [vmem:[%s389 + $0x10] sm:$0x3]
  %v762 = vld [vmem:[%s389 + $0x12] sm:$0x3]
  %v763 = vld [vmem:[%s389 + $0x14] sm:$0x3]
  %v764 = vld [vmem:[%s389 + $0x16] sm:$0x3]
  %v765 = vld [vmem:[%s389 + $0x18] sm:$0x3]
  %v766 = vld [vmem:[%s389 + $0x1a] sm:$0x3]
  %v767 = vld [vmem:[%s389 + $0x1c] sm:$0x3]
  %v768 = vmax.f32 %v738, %v753
  %v769 = vmax.f32 %v739, %v754
  %v770 = vmax.f32 %v740, %v755
  %v771 = vmax.f32 %v741, %v756
  %v772 = vmax.f32 %v742, %v757
  %v773 = vmax.f32 %v743, %v758
  %v774 = vmax.f32 %v744, %v759
  %v775 = vmax.f32 %v745, %v760
  %v776 = vmax.f32 %v746, %v761
  %v777 = vmax.f32 %v747, %v762
  %v778 = vmax.f32 %v748, %v763
  %v779 = vmax.f32 %v749, %v764
  %v780 = vmax.f32 %v750, %v765
  %v781 = vmax.f32 %v751, %v766
  %v782 = vmax.f32 %v752, %v767
  %v783 = vld [vmem:[%s420] sm:$0x3]
  %v784 = vld [vmem:[%s420 + $0x2] sm:$0x3]
  %v785 = vld [vmem:[%s420 + $0x4] sm:$0x3]
  %v786 = vld [vmem:[%s420 + $0x6] sm:$0x3]
  %v787 = vld [vmem:[%s420 + $0x8] sm:$0x3]
  %v788 = vld [vmem:[%s420 + $0xa] sm:$0x3]
  %v789 = vld [vmem:[%s420 + $0xc] sm:$0x3]
  %v790 = vld [vmem:[%s420 + $0xe] sm:$0x3]
  %v791 = vld [vmem:[%s420 + $0x10] sm:$0x3]
  %v792 = vld [vmem:[%s420 + $0x12] sm:$0x3]
  %v793 = vld [vmem:[%s420 + $0x14] sm:$0x3]
  %v794 = vld [vmem:[%s420 + $0x16] sm:$0x3]
  %v795 = vld [vmem:[%s420 + $0x18] sm:$0x3]
  %v796 = vld [vmem:[%s420 + $0x1a] sm:$0x3]
  %v797 = vld [vmem:[%s420 + $0x1c] sm:$0x3]
  %v798 = vmax.f32 %v768, %v783
  %v799 = vmax.f32 %v769, %v784
  %v800 = vmax.f32 %v770, %v785
  %v801 = vmax.f32 %v771, %v786
  %v802 = vmax.f32 %v772, %v787
  %v803 = vmax.f32 %v773, %v788
  %v804 = vmax.f32 %v774, %v789
  %v805 = vmax.f32 %v775, %v790
  %v806 = vmax.f32 %v776, %v791
  %v807 = vmax.f32 %v777, %v792
  %v808 = vmax.f32 %v778, %v793
  %v809 = vmax.f32 %v779, %v794
  %v810 = vmax.f32 %v780, %v795
  %v811 = vmax.f32 %v781, %v796
  %v812 = vmax.f32 %v782, %v797
  %v813 = vld [vmem:[%s631] sm:$0x3]
  %v814 = vld [vmem:[%s631 + $0x2] sm:$0x3]
  %v815 = vld [vmem:[%s631 + $0x4] sm:$0x3]
  %v816 = vld [vmem:[%s631 + $0x6] sm:$0x3]
  %v817 = vld [vmem:[%s631 + $0x8] sm:$0x3]
  %v818 = vld [vmem:[%s631 + $0xa] sm:$0x3]
  %v819 = vld [vmem:[%s631 + $0xc] sm:$0x3]
  %v820 = vld [vmem:[%s631 + $0xe] sm:$0x3]
  %v821 = vld [vmem:[%s631 + $0x10] sm:$0x3]
  %v822 = vld [vmem:[%s631 + $0x12] sm:$0x3]
  %v823 = vld [vmem:[%s631 + $0x14] sm:$0x3]
  %v824 = vld [vmem:[%s631 + $0x16] sm:$0x3]
  %v825 = vld [vmem:[%s631 + $0x18] sm:$0x3]
  %v826 = vld [vmem:[%s631 + $0x1a] sm:$0x3]
  %v827 = vld [vmem:[%s631 + $0x1c] sm:$0x3]
  %v828 = vmax.f32 %v798, %v813
  %v829 = vmax.f32 %v799, %v814
  %v830 = vmax.f32 %v800, %v815
  %v831 = vmax.f32 %v801, %v816
  %v832 = vmax.f32 %v802, %v817
  %v833 = vmax.f32 %v803, %v818
  %v834 = vmax.f32 %v804, %v819
  %v835 = vmax.f32 %v805, %v820
  %v836 = vmax.f32 %v806, %v821
  %v837 = vmax.f32 %v807, %v822
  %v838 = vmax.f32 %v808, %v823
  %v839 = vmax.f32 %v809, %v824
  %v840 = vmax.f32 %v810, %v825
  %v841 = vmax.f32 %v811, %v826
  %v842 = vmax.f32 %v812, %v827
  %v843 = vld [vmem:[%s662] sm:$0x3]
  %v844 = vld [vmem:[%s662 + $0x2] sm:$0x3]
  %v845 = vld [vmem:[%s662 + $0x4] sm:$0x3]
  %v846 = vld [vmem:[%s662 + $0x6] sm:$0x3]
  %v847 = vld [vmem:[%s662 + $0x8] sm:$0x3]
  %v848 = vld [vmem:[%s662 + $0xa] sm:$0x3]
  %v849 = vld [vmem:[%s662 + $0xc] sm:$0x3]
  %v850 = vld [vmem:[%s662 + $0xe] sm:$0x3]
  %v851 = vld [vmem:[%s662 + $0x10] sm:$0x3]
  %v852 = vld [vmem:[%s662 + $0x12] sm:$0x3]
  %v853 = vld [vmem:[%s662 + $0x14] sm:$0x3]
  %v854 = vld [vmem:[%s662 + $0x16] sm:$0x3]
  %v855 = vld [vmem:[%s662 + $0x18] sm:$0x3]
  %v856 = vld [vmem:[%s662 + $0x1a] sm:$0x3]
  %v857 = vld [vmem:[%s662 + $0x1c] sm:$0x3]
  %v858 = vmax.f32 %v828, %v843
  %v859 = vmax.f32 %v829, %v844
  %v860 = vmax.f32 %v830, %v845
  %v861 = vmax.f32 %v831, %v846
  %v862 = vmax.f32 %v832, %v847
  %v863 = vmax.f32 %v833, %v848
  %v864 = vmax.f32 %v834, %v849
  %v865 = vmax.f32 %v835, %v850
  %v866 = vmax.f32 %v836, %v851
  %v867 = vmax.f32 %v837, %v852
  %v868 = vmax.f32 %v838, %v853
  %v869 = vmax.f32 %v839, %v854
  %v870 = vmax.f32 %v840, %v855
  %v871 = vmax.f32 %v841, %v856
  %v872 = vmax.f32 %v842, %v857
  %s873 = scalar_lea.vmem %s0, 352
  %v874 = vld [vmem:[%s873] sm:$0x3]
  %v875 = vld [vmem:[%s873 + $0x2] sm:$0x3]
  %v876 = vld [vmem:[%s873 + $0x4] sm:$0x3]
  %v877 = vld [vmem:[%s873 + $0x6] sm:$0x3]
  %v878 = vld [vmem:[%s873 + $0x8] sm:$0x3]
  %v879 = vld [vmem:[%s873 + $0xa] sm:$0x3]
  %v880 = vld [vmem:[%s873 + $0xc] sm:$0x3]
  %v881 = vld [vmem:[%s873 + $0xe] sm:$0x3]
  %v882 = vld [vmem:[%s873 + $0x10] sm:$0x3]
  %v883 = vld [vmem:[%s873 + $0x12] sm:$0x3]
  %v884 = vld [vmem:[%s873 + $0x14] sm:$0x3]
  %v885 = vld [vmem:[%s873 + $0x16] sm:$0x3]
  %v886 = vld [vmem:[%s873 + $0x18] sm:$0x3]
  %v887 = vld [vmem:[%s873 + $0x1a] sm:$0x3]
  %v888 = vld [vmem:[%s873 + $0x1c] sm:$0x3]
  %v889 = vmax.f32 %v858, %v874
  %v890 = vmax.f32 %v859, %v875
  %v891 = vmax.f32 %v860, %v876
  %v892 = vmax.f32 %v861, %v877
  %v893 = vmax.f32 %v862, %v878
  %v894 = vmax.f32 %v863, %v879
  %v895 = vmax.f32 %v864, %v880
  %v896 = vmax.f32 %v865, %v881
  %v897 = vmax.f32 %v866, %v882
  %v898 = vmax.f32 %v867, %v883
  %v899 = vmax.f32 %v868, %v884
  %v900 = vmax.f32 %v869, %v885
  %v901 = vmax.f32 %v870, %v886
  %v902 = vmax.f32 %v871, %v887
  %v903 = vmax.f32 %v872, %v888
  %s904 = scalar_lea.vmem %s0, 384
  %v905 = vld [vmem:[%s904] sm:$0x3]
  %v906 = vld [vmem:[%s904 + $0x2] sm:$0x3]
  %v907 = vld [vmem:[%s904 + $0x4] sm:$0x3]
  %v908 = vld [vmem:[%s904 + $0x6] sm:$0x3]
  %v909 = vld [vmem:[%s904 + $0x8] sm:$0x3]
  %v910 = vld [vmem:[%s904 + $0xa] sm:$0x3]
  %v911 = vld [vmem:[%s904 + $0xc] sm:$0x3]
  %v912 = vld [vmem:[%s904 + $0xe] sm:$0x3]
  %v913 = vld [vmem:[%s904 + $0x10] sm:$0x3]
  %v914 = vld [vmem:[%s904 + $0x12] sm:$0x3]
  %v915 = vld [vmem:[%s904 + $0x14] sm:$0x3]
  %v916 = vld [vmem:[%s904 + $0x16] sm:$0x3]
  %v917 = vld [vmem:[%s904 + $0x18] sm:$0x3]
  %v918 = vld [vmem:[%s904 + $0x1a] sm:$0x3]
  %v919 = vld [vmem:[%s904 + $0x1c] sm:$0x3]
  %v920 = vmax.f32 %v889, %v905
  %v921 = vmax.f32 %v890, %v906
  %v922 = vmax.f32 %v891, %v907
  %v923 = vmax.f32 %v892, %v908
  %v924 = vmax.f32 %v893, %v909
  %v925 = vmax.f32 %v894, %v910
  %v926 = vmax.f32 %v895, %v911
  %v927 = vmax.f32 %v896, %v912
  %v928 = vmax.f32 %v897, %v913
  %v929 = vmax.f32 %v898, %v914
  %v930 = vmax.f32 %v899, %v915
  %v931 = vmax.f32 %v900, %v916
  %v932 = vmax.f32 %v901, %v917
  %v933 = vmax.f32 %v902, %v918
  %v934 = vmax.f32 %v903, %v919
  %v935 = vmax.f32 %v920, %v921
  %v936 = vmax.f32 %v935, %v922
  %v937 = vmax.f32 %v936, %v923
  %v938 = vmax.f32 %v937, %v924
  %v939 = vmax.f32 %v938, %v925
  %v940 = vmax.f32 %v939, %v926
  %v941 = vmax.f32 %v940, 0.0
  %s942 = scalar_lea.vmem %s1, 30
  %943 = vst.msk [vmem:[%s942] sm:$0x3] %vm216, %v941
  %v944 = vmax.f32 %v922, %v923
  %v945 = vmax.f32 %v944, %v924
  %v946 = vmax.f32 %v945, %v925
  %v947 = vmax.f32 %v946, %v926
  %v948 = vmax.f32 %v947, %v927
  %v949 = vmax.f32 %v948, %v928
  %v950 = vmax.f32 %v949, 0.0
  %s951 = scalar_lea.vmem %s1, 32
  %952 = vst.msk [vmem:[%s951] sm:$0x3] %vm216, %v950
  %v953 = vmax.f32 %v924, %v925
  %v954 = vmax.f32 %v953, %v926
  %v955 = vmax.f32 %v954, %v927
  %v956 = vmax.f32 %v955, %v928
  %v957 = vmax.f32 %v956, %v929
  %v958 = vmax.f32 %v957, %v930
  %v959 = vmax.f32 %v958, 0.0
  %s960 = scalar_lea.vmem %s1, 34
  %961 = vst.msk [vmem:[%s960] sm:$0x3] %vm216, %v959
  %v962 = vmax.f32 %v926, %v927
  %v963 = vmax.f32 %v962, %v928
  %v964 = vmax.f32 %v963, %v929
  %v965 = vmax.f32 %v964, %v930
  %v966 = vmax.f32 %v965, %v931
  %v967 = vmax.f32 %v966, %v932
  %v968 = vmax.f32 %v967, 0.0
  %s969 = scalar_lea.vmem %s1, 36
  %970 = vst.msk [vmem:[%s969] sm:$0x3] %vm216, %v968
  %v971 = vmax.f32 %v928, %v929
  %v972 = vmax.f32 %v971, %v930
  %v973 = vmax.f32 %v972, %v931
  %v974 = vmax.f32 %v973, %v932
  %v975 = vmax.f32 %v974, %v933
  %v976 = vmax.f32 %v975, %v934
  %v977 = vmax.f32 %v976, 0.0
  %s978 = scalar_lea.vmem %s1, 38
  %979 = vst.msk [vmem:[%s978] sm:$0x3] %vm216, %v977
  %v980 = vld [vmem:[%s420] sm:$0x3]
  %v981 = vld [vmem:[%s420 + $0x2] sm:$0x3]
  %v982 = vld [vmem:[%s420 + $0x4] sm:$0x3]
  %v983 = vld [vmem:[%s420 + $0x6] sm:$0x3]
  %v984 = vld [vmem:[%s420 + $0x8] sm:$0x3]
  %v985 = vld [vmem:[%s420 + $0xa] sm:$0x3]
  %v986 = vld [vmem:[%s420 + $0xc] sm:$0x3]
  %v987 = vld [vmem:[%s420 + $0xe] sm:$0x3]
  %v988 = vld [vmem:[%s420 + $0x10] sm:$0x3]
  %v989 = vld [vmem:[%s420 + $0x12] sm:$0x3]
  %v990 = vld [vmem:[%s420 + $0x14] sm:$0x3]
  %v991 = vld [vmem:[%s420 + $0x16] sm:$0x3]
  %v992 = vld [vmem:[%s420 + $0x18] sm:$0x3]
  %v993 = vld [vmem:[%s420 + $0x1a] sm:$0x3]
  %v994 = vld [vmem:[%s420 + $0x1c] sm:$0x3]
  %v995 = vld [vmem:[%s631] sm:$0x3]
  %v996 = vld [vmem:[%s631 + $0x2] sm:$0x3]
  %v997 = vld [vmem:[%s631 + $0x4] sm:$0x3]
  %v998 = vld [vmem:[%s631 + $0x6] sm:$0x3]
  %v999 = vld [vmem:[%s631 + $0x8] sm:$0x3]
  %v1000 = vld [vmem:[%s631 + $0xa] sm:$0x3]
  %v1001 = vld [vmem:[%s631 + $0xc] sm:$0x3]
  %v1002 = vld [vmem:[%s631 + $0xe] sm:$0x3]
  %v1003 = vld [vmem:[%s631 + $0x10] sm:$0x3]
  %v1004 = vld [vmem:[%s631 + $0x12] sm:$0x3]
  %v1005 = vld [vmem:[%s631 + $0x14] sm:$0x3]
  %v1006 = vld [vmem:[%s631 + $0x16] sm:$0x3]
  %v1007 = vld [vmem:[%s631 + $0x18] sm:$0x3]
  %v1008 = vld [vmem:[%s631 + $0x1a] sm:$0x3]
  %v1009 = vld [vmem:[%s631 + $0x1c] sm:$0x3]
  %v1010 = vmax.f32 %v980, %v995
  %v1011 = vmax.f32 %v981, %v996
  %v1012 = vmax.f32 %v982, %v997
  %v1013 = vmax.f32 %v983, %v998
  %v1014 = vmax.f32 %v984, %v999
  %v1015 = vmax.f32 %v985, %v1000
  %v1016 = vmax.f32 %v986, %v1001
  %v1017 = vmax.f32 %v987, %v1002
  %v1018 = vmax.f32 %v988, %v1003
  %v1019 = vmax.f32 %v989, %v1004
  %v1020 = vmax.f32 %v990, %v1005
  %v1021 = vmax.f32 %v991, %v1006
  %v1022 = vmax.f32 %v992, %v1007
  %v1023 = vmax.f32 %v993, %v1008
  %v1024 = vmax.f32 %v994, %v1009
  %v1025 = vld [vmem:[%s662] sm:$0x3]
  %v1026 = vld [vmem:[%s662 + $0x2] sm:$0x3]
  %v1027 = vld [vmem:[%s662 + $0x4] sm:$0x3]
  %v1028 = vld [vmem:[%s662 + $0x6] sm:$0x3]
  %v1029 = vld [vmem:[%s662 + $0x8] sm:$0x3]
  %v1030 = vld [vmem:[%s662 + $0xa] sm:$0x3]
  %v1031 = vld [vmem:[%s662 + $0xc] sm:$0x3]
  %v1032 = vld [vmem:[%s662 + $0xe] sm:$0x3]
  %v1033 = vld [vmem:[%s662 + $0x10] sm:$0x3]
  %v1034 = vld [vmem:[%s662 + $0x12] sm:$0x3]
  %v1035 = vld [vmem:[%s662 + $0x14] sm:$0x3]
  %v1036 = vld [vmem:[%s662 + $0x16] sm:$0x3]
  %v1037 = vld [vmem:[%s662 + $0x18] sm:$0x3]
  %v1038 = vld [vmem:[%s662 + $0x1a] sm:$0x3]
  %v1039 = vld [vmem:[%s662 + $0x1c] sm:$0x3]
  %v1040 = vmax.f32 %v1010, %v1025
  %v1041 = vmax.f32 %v1011, %v1026
  %v1042 = vmax.f32 %v1012, %v1027
  %v1043 = vmax.f32 %v1013, %v1028
  %v1044 = vmax.f32 %v1014, %v1029
  %v1045 = vmax.f32 %v1015, %v1030
  %v1046 = vmax.f32 %v1016, %v1031
  %v1047 = vmax.f32 %v1017, %v1032
  %v1048 = vmax.f32 %v1018, %v1033
  %v1049 = vmax.f32 %v1019, %v1034
  %v1050 = vmax.f32 %v1020, %v1035
  %v1051 = vmax.f32 %v1021, %v1036
  %v1052 = vmax.f32 %v1022, %v1037
  %v1053 = vmax.f32 %v1023, %v1038
  %v1054 = vmax.f32 %v1024, %v1039
  %v1055 = vld [vmem:[%s873] sm:$0x3]
  %v1056 = vld [vmem:[%s873 + $0x2] sm:$0x3]
  %v1057 = vld [vmem:[%s873 + $0x4] sm:$0x3]
  %v1058 = vld [vmem:[%s873 + $0x6] sm:$0x3]
  %v1059 = vld [vmem:[%s873 + $0x8] sm:$0x3]
  %v1060 = vld [vmem:[%s873 + $0xa] sm:$0x3]
  %v1061 = vld [vmem:[%s873 + $0xc] sm:$0x3]
  %v1062 = vld [vmem:[%s873 + $0xe] sm:$0x3]
  %v1063 = vld [vmem:[%s873 + $0x10] sm:$0x3]
  %v1064 = vld [vmem:[%s873 + $0x12] sm:$0x3]
  %v1065 = vld [vmem:[%s873 + $0x14] sm:$0x3]
  %v1066 = vld [vmem:[%s873 + $0x16] sm:$0x3]
  %v1067 = vld [vmem:[%s873 + $0x18] sm:$0x3]
  %v1068 = vld [vmem:[%s873 + $0x1a] sm:$0x3]
  %v1069 = vld [vmem:[%s873 + $0x1c] sm:$0x3]
  %v1070 = vmax.f32 %v1040, %v1055
  %v1071 = vmax.f32 %v1041, %v1056
  %v1072 = vmax.f32 %v1042, %v1057
  %v1073 = vmax.f32 %v1043, %v1058
  %v1074 = vmax.f32 %v1044, %v1059
  %v1075 = vmax.f32 %v1045, %v1060
  %v1076 = vmax.f32 %v1046, %v1061
  %v1077 = vmax.f32 %v1047, %v1062
  %v1078 = vmax.f32 %v1048, %v1063
  %v1079 = vmax.f32 %v1049, %v1064
  %v1080 = vmax.f32 %v1050, %v1065
  %v1081 = vmax.f32 %v1051, %v1066
  %v1082 = vmax.f32 %v1052, %v1067
  %v1083 = vmax.f32 %v1053, %v1068
  %v1084 = vmax.f32 %v1054, %v1069
  %v1085 = vld [vmem:[%s904] sm:$0x3]
  %v1086 = vld [vmem:[%s904 + $0x2] sm:$0x3]
  %v1087 = vld [vmem:[%s904 + $0x4] sm:$0x3]
  %v1088 = vld [vmem:[%s904 + $0x6] sm:$0x3]
  %v1089 = vld [vmem:[%s904 + $0x8] sm:$0x3]
  %v1090 = vld [vmem:[%s904 + $0xa] sm:$0x3]
  %v1091 = vld [vmem:[%s904 + $0xc] sm:$0x3]
  %v1092 = vld [vmem:[%s904 + $0xe] sm:$0x3]
  %v1093 = vld [vmem:[%s904 + $0x10] sm:$0x3]
  %v1094 = vld [vmem:[%s904 + $0x12] sm:$0x3]
  %v1095 = vld [vmem:[%s904 + $0x14] sm:$0x3]
  %v1096 = vld [vmem:[%s904 + $0x16] sm:$0x3]
  %v1097 = vld [vmem:[%s904 + $0x18] sm:$0x3]
  %v1098 = vld [vmem:[%s904 + $0x1a] sm:$0x3]
  %v1099 = vld [vmem:[%s904 + $0x1c] sm:$0x3]
  %v1100 = vmax.f32 %v1070, %v1085
  %v1101 = vmax.f32 %v1071, %v1086
  %v1102 = vmax.f32 %v1072, %v1087
  %v1103 = vmax.f32 %v1073, %v1088
  %v1104 = vmax.f32 %v1074, %v1089
  %v1105 = vmax.f32 %v1075, %v1090
  %v1106 = vmax.f32 %v1076, %v1091
  %v1107 = vmax.f32 %v1077, %v1092
  %v1108 = vmax.f32 %v1078, %v1093
  %v1109 = vmax.f32 %v1079, %v1094
  %v1110 = vmax.f32 %v1080, %v1095
  %v1111 = vmax.f32 %v1081, %v1096
  %v1112 = vmax.f32 %v1082, %v1097
  %v1113 = vmax.f32 %v1083, %v1098
  %v1114 = vmax.f32 %v1084, %v1099
  %s1115 = scalar_lea.vmem %s0, 416
  %v1116 = vld [vmem:[%s1115] sm:$0x3]
  %v1117 = vld [vmem:[%s1115 + $0x2] sm:$0x3]
  %v1118 = vld [vmem:[%s1115 + $0x4] sm:$0x3]
  %v1119 = vld [vmem:[%s1115 + $0x6] sm:$0x3]
  %v1120 = vld [vmem:[%s1115 + $0x8] sm:$0x3]
  %v1121 = vld [vmem:[%s1115 + $0xa] sm:$0x3]
  %v1122 = vld [vmem:[%s1115 + $0xc] sm:$0x3]
  %v1123 = vld [vmem:[%s1115 + $0xe] sm:$0x3]
  %v1124 = vld [vmem:[%s1115 + $0x10] sm:$0x3]
  %v1125 = vld [vmem:[%s1115 + $0x12] sm:$0x3]
  %v1126 = vld [vmem:[%s1115 + $0x14] sm:$0x3]
  %v1127 = vld [vmem:[%s1115 + $0x16] sm:$0x3]
  %v1128 = vld [vmem:[%s1115 + $0x18] sm:$0x3]
  %v1129 = vld [vmem:[%s1115 + $0x1a] sm:$0x3]
  %v1130 = vld [vmem:[%s1115 + $0x1c] sm:$0x3]
  %v1131 = vmax.f32 %v1100, %v1116
  %v1132 = vmax.f32 %v1101, %v1117
  %v1133 = vmax.f32 %v1102, %v1118
  %v1134 = vmax.f32 %v1103, %v1119
  %v1135 = vmax.f32 %v1104, %v1120
  %v1136 = vmax.f32 %v1105, %v1121
  %v1137 = vmax.f32 %v1106, %v1122
  %v1138 = vmax.f32 %v1107, %v1123
  %v1139 = vmax.f32 %v1108, %v1124
  %v1140 = vmax.f32 %v1109, %v1125
  %v1141 = vmax.f32 %v1110, %v1126
  %v1142 = vmax.f32 %v1111, %v1127
  %v1143 = vmax.f32 %v1112, %v1128
  %v1144 = vmax.f32 %v1113, %v1129
  %v1145 = vmax.f32 %v1114, %v1130
  %s1146 = scalar_lea.vmem %s0, 448
  %v1147 = vld [vmem:[%s1146] sm:$0x3]
  %v1148 = vld [vmem:[%s1146 + $0x2] sm:$0x3]
  %v1149 = vld [vmem:[%s1146 + $0x4] sm:$0x3]
  %v1150 = vld [vmem:[%s1146 + $0x6] sm:$0x3]
  %v1151 = vld [vmem:[%s1146 + $0x8] sm:$0x3]
  %v1152 = vld [vmem:[%s1146 + $0xa] sm:$0x3]
  %v1153 = vld [vmem:[%s1146 + $0xc] sm:$0x3]
  %v1154 = vld [vmem:[%s1146 + $0xe] sm:$0x3]
  %v1155 = vld [vmem:[%s1146 + $0x10] sm:$0x3]
  %v1156 = vld [vmem:[%s1146 + $0x12] sm:$0x3]
  %v1157 = vld [vmem:[%s1146 + $0x14] sm:$0x3]
  %v1158 = vld [vmem:[%s1146 + $0x16] sm:$0x3]
  %v1159 = vld [vmem:[%s1146 + $0x18] sm:$0x3]
  %v1160 = vld [vmem:[%s1146 + $0x1a] sm:$0x3]
  %v1161 = vld [vmem:[%s1146 + $0x1c] sm:$0x3]
  %v1162 = vmax.f32 %v1131, %v1147
  %v1163 = vmax.f32 %v1132, %v1148
  %v1164 = vmax.f32 %v1133, %v1149
  %v1165 = vmax.f32 %v1134, %v1150
  %v1166 = vmax.f32 %v1135, %v1151
  %v1167 = vmax.f32 %v1136, %v1152
  %v1168 = vmax.f32 %v1137, %v1153
  %v1169 = vmax.f32 %v1138, %v1154
  %v1170 = vmax.f32 %v1139, %v1155
  %v1171 = vmax.f32 %v1140, %v1156
  %v1172 = vmax.f32 %v1141, %v1157
  %v1173 = vmax.f32 %v1142, %v1158
  %v1174 = vmax.f32 %v1143, %v1159
  %v1175 = vmax.f32 %v1144, %v1160
  %v1176 = vmax.f32 %v1145, %v1161
  %v1177 = vmax.f32 %v1162, %v1163
  %v1178 = vmax.f32 %v1177, %v1164
  %v1179 = vmax.f32 %v1178, %v1165
  %v1180 = vmax.f32 %v1179, %v1166
  %v1181 = vmax.f32 %v1180, %v1167
  %v1182 = vmax.f32 %v1181, %v1168
  %v1183 = vmax.f32 %v1182, 0.0
  %s1184 = scalar_lea.vmem %s1, 40
  %1185 = vst.msk [vmem:[%s1184] sm:$0x3] %vm216, %v1183
  %v1186 = vmax.f32 %v1164, %v1165
  %v1187 = vmax.f32 %v1186, %v1166
  %v1188 = vmax.f32 %v1187, %v1167
  %v1189 = vmax.f32 %v1188, %v1168
  %v1190 = vmax.f32 %v1189, %v1169
  %v1191 = vmax.f32 %v1190, %v1170
  %v1192 = vmax.f32 %v1191, 0.0
  %s1193 = scalar_lea.vmem %s1, 42
  %1194 = vst.msk [vmem:[%s1193] sm:$0x3] %vm216, %v1192
  %v1195 = vmax.f32 %v1166, %v1167
  %v1196 = vmax.f32 %v1195, %v1168
  %v1197 = vmax.f32 %v1196, %v1169
  %v1198 = vmax.f32 %v1197, %v1170
  %v1199 = vmax.f32 %v1198, %v1171
  %v1200 = vmax.f32 %v1199, %v1172
  %v1201 = vmax.f32 %v1200, 0.0
  %s1202 = scalar_lea.vmem %s1, 44
  %1203 = vst.msk [vmem:[%s1202] sm:$0x3] %vm216, %v1201
  %v1204 = vmax.f32 %v1168, %v1169
  %v1205 = vmax.f32 %v1204, %v1170
  %v1206 = vmax.f32 %v1205, %v1171
  %v1207 = vmax.f32 %v1206, %v1172
  %v1208 = vmax.f32 %v1207, %v1173
  %v1209 = vmax.f32 %v1208, %v1174
  %v1210 = vmax.f32 %v1209, 0.0
  %s1211 = scalar_lea.vmem %s1, 46
  %1212 = vst.msk [vmem:[%s1211] sm:$0x3] %vm216, %v1210
  %v1213 = vmax.f32 %v1170, %v1171
  %v1214 = vmax.f32 %v1213, %v1172
  %v1215 = vmax.f32 %v1214, %v1173
  %v1216 = vmax.f32 %v1215, %v1174
  %v1217 = vmax.f32 %v1216, %v1175
  %v1218 = vmax.f32 %v1217, %v1176
  %v1219 = vmax.f32 %v1218, 0.0
  %s1220 = scalar_lea.vmem %s1, 48
  %1221 = vst.msk [vmem:[%s1220] sm:$0x3] %vm216, %v1219
  // Predicated region
  $region6: #{tpu_custom_call.1} parent=0 // pred_check
    _
  $region7: #{tpu_custom_call.1} parent=0 // pred_check_branch
    %1223 = sbr.rel (0) target = $region9
  $region8: #{tpu_custom_call.1} parent=0 // pred_region
    _
  $region9: #{tpu_custom_call.1} parent=0 // pred_fallthru
    _
  // Predicated region
  $region10: #{tpu_custom_call.1} parent=0 // pred_check
    _
  $region11: #{tpu_custom_call.1} parent=0 // pred_check_branch
    %1225 = sbr.rel (0) target = $region13
  $region12: #{tpu_custom_call.1} parent=0 // pred_region
    _
  $region13: #{tpu_custom_call.1} parent=0 // pred_fallthru
    _

</llo_original>
